<compile_context>
chip_gen: v6e
topology: v6e:2x2x1
jax: 0.10.0
libtpu: 0.0.40
codegen_flags: <defaults>
</compile_context>

<pallas_src>
import math
import functools

import jax
import jax.numpy as jnp
from jax.experimental import pallas as pl
from jax.experimental.pallas import tpu as pltpu

_LN_EPS = 1e-5


# ---------------------------------------------------------------------------
# Kernels
# ---------------------------------------------------------------------------

def _attn_block_kernel(x_ref, mask_ref,
                       wq_ref, bq_ref, wk_ref, bk_ref, wv_ref, bv_ref,
                       wo_ref, bo_ref, g_ref, beta_ref,
                       o_ref, acc_ref, *, head_dim, eps):
    """One (batch, head) grid step of self-attention fused with residual+LN.

    x_ref: (S, D) resident across the head axis.  Per-head weight slices:
    wq/wk/wv (D, hd), biases (1, hd), wo (hd, D).  acc_ref: (S, D) f32.
    """
    h = pl.program_id(1)
    x = x_ref[...].astype(jnp.float32)                        # (S, D)

    @pl.when(h == 0)
    def _():
        # Seed the accumulator with the residual; finalize only adds bias.
        acc_ref[...] = x

    scale = 1.0 / math.sqrt(head_dim)
    q = (jnp.dot(x, wq_ref[...], preferred_element_type=jnp.float32)
         + bq_ref[...]) * scale                               # (S, hd)
    k = jnp.dot(x, wk_ref[...], preferred_element_type=jnp.float32) + bk_ref[...]
    v = jnp.dot(x, wv_ref[...], preferred_element_type=jnp.float32) + bv_ref[...]

    # scores = q @ k^T without an explicit transpose: contract last dims.
    scores = jax.lax.dot_general(
        q, k, (((1,), (1,)), ((), ())),
        preferred_element_type=jnp.float32) + mask_ref[...]   # (S, S)

    m = jnp.max(scores, axis=-1, keepdims=True)
    e = jnp.exp(scores - m)
    denom = jnp.sum(e, axis=-1, keepdims=True)
    probs = e * pl.reciprocal(denom, approx=True)             # EUP slot, ~free

    ctx = jnp.dot(probs, v, preferred_element_type=jnp.float32)   # (S, hd)

    # Per-head slice of the output projection, accumulated over heads.
    acc_ref[...] += jnp.dot(ctx, wo_ref[...], preferred_element_type=jnp.float32)

    @pl.when(h == pl.num_programs(1) - 1)
    def _():
        y = acc_ref[...] + bo_ref[...]                        # residual already in
        mu = jnp.mean(y, axis=-1, keepdims=True)
        yc = y - mu
        var = jnp.mean(yc * yc, axis=-1, keepdims=True)
        yn = yc * jax.lax.rsqrt(var + eps)
        o_ref[...] = (yn * g_ref[...] + beta_ref[...]).astype(o_ref.dtype)


def _ffn_block_kernel(x_ref, w1_ref, b1_ref, w2_ref, b2_ref,
                      g_ref, beta_ref, o_ref, acc_ref, *, eps):
    """One (batch, F-tile) grid step of fc2(gelu(fc1(x))) fused with residual+LN.

    x_ref: (S, D) resident across the F axis.  w1 (D, tf), b1 (1, tf),
    w2 (tf, D), b2 (1, D).  acc_ref: (S, D) f32.
    """
    f = pl.program_id(1)
    x = x_ref[...].astype(jnp.float32)                        # (S, D)

    @pl.when(f == 0)
    def _():
        acc_ref[...] = x                                      # seed with residual

    hmid = jnp.dot(x, w1_ref[...], preferred_element_type=jnp.float32) + b1_ref[...]
    hmid = jax.nn.gelu(hmid, approximate=True)                # tanh-approx GELU
    acc_ref[...] += jnp.dot(hmid, w2_ref[...], preferred_element_type=jnp.float32)

    @pl.when(f == pl.num_programs(1) - 1)
    def _():
        y = acc_ref[...] + b2_ref[...]
        mu = jnp.mean(y, axis=-1, keepdims=True)
        yc = y - mu
        var = jnp.mean(yc * yc, axis=-1, keepdims=True)
        yn = yc * jax.lax.rsqrt(var + eps)
        o_ref[...] = (yn * g_ref[...] + beta_ref[...]).astype(o_ref.dtype)


# ---------------------------------------------------------------------------
# Wrappers
# ---------------------------------------------------------------------------

def attention_layernorm_pallas(x, mask, p, ln_g, ln_b, num_heads):
    """LayerNorm(self_attention(x) + x) as one pallas_call, grid (B, H)."""
    B, S, D = x.shape
    assert D % num_heads == 0, "d_model must be divisible by num_heads"
    hd = D // num_heads

    # Pre-split weights per head (plain JAX, outside the kernel):
    #   wq/wk/wv: (D, D) -> (H, D, hd);  biases: (1, D) -> (H, 1, hd)
    #   wo:       (D, D) -> (H, hd, D)
    def split_out(w):
        return w.reshape(D, num_heads, hd).transpose(1, 0, 2)

    def split_bias(b):
        return b.reshape(num_heads, 1, hd)

    wq_h, wk_h, wv_h = split_out(p["wq"]), split_out(p["wk"]), split_out(p["wv"])
    bq_h, bk_h, bv_h = split_bias(p["bq"]), split_bias(p["bk"]), split_bias(p["bv"])
    wo_h = p["wo"].reshape(num_heads, hd, D)

    kernel = functools.partial(_attn_block_kernel, head_dim=hd, eps=_LN_EPS)

    head_slice = lambda shape: pl.BlockSpec(shape, lambda b, h: (h, 0, 0))
    const2d = lambda shape: pl.BlockSpec(shape, lambda b, h: (0, 0))

    return pl.pallas_call(
        kernel,
        out_shape=jax.ShapeDtypeStruct((B, S, D), x.dtype),
        grid=(B, num_heads),
        in_specs=[
            pl.BlockSpec((None, S, D), lambda b, h: (b, 0, 0)),    # x (resident)
            pl.BlockSpec((None, S, S), lambda b, h: (b, 0, 0)),    # mask (resident)
            head_slice((None, D, hd)), head_slice((None, 1, hd)),  # wq, bq
            head_slice((None, D, hd)), head_slice((None, 1, hd)),  # wk, bk
            head_slice((None, D, hd)), head_slice((None, 1, hd)),  # wv, bv
            head_slice((None, hd, D)), const2d((1, D)),            # wo, bo
            const2d((1, D)), const2d((1, D)),                      # ln gamma, beta
        ],
        out_specs=pl.BlockSpec((None, S, D), lambda b, h: (b, 0, 0)),
        scratch_shapes=[pltpu.VMEM((S, D), jnp.float32)],
        compiler_params=pltpu.CompilerParams(
            dimension_semantics=("parallel", "arbitrary")),
    )(x, mask, wq_h, bq_h, wk_h, bk_h, wv_h, bv_h, wo_h,
      p["bo"], ln_g, ln_b)


def _pick_f_tile(F):
    for tf in (512, 256, 128):
        if F % tf == 0:
            return tf
    return F  # small / odd F: single tile


def ffn_layernorm_pallas(x, p, ln_g, ln_b):
    """LayerNorm(fc2(gelu(fc1(x))) + x) as one pallas_call, grid (B, F//tf)."""
    B, S, D = x.shape
    F = p["w1"].shape[1]
    tf = _pick_f_tile(F)
    n_f = F // tf

    kernel = functools.partial(_ffn_block_kernel, eps=_LN_EPS)
    const2d = lambda shape: pl.BlockSpec(shape, lambda b, f: (0, 0))

    return pl.pallas_call(
        kernel,
        out_shape=jax.ShapeDtypeStruct((B, S, D), x.dtype),
        grid=(B, n_f),
        in_specs=[
            pl.BlockSpec((None, S, D), lambda b, f: (b, 0, 0)),    # x (resident)
            pl.BlockSpec((D, tf), lambda b, f: (0, f)),            # w1 tile
            pl.BlockSpec((1, tf), lambda b, f: (0, f)),            # b1 tile
            pl.BlockSpec((tf, D), lambda b, f: (f, 0)),            # w2 tile
            const2d((1, D)),                                       # b2
            const2d((1, D)), const2d((1, D)),                      # ln gamma, beta
        ],
        out_specs=pl.BlockSpec((None, S, D), lambda b, f: (b, 0, 0)),
        scratch_shapes=[pltpu.VMEM((S, D), jnp.float32)],
        compiler_params=pltpu.CompilerParams(
            dimension_semantics=("parallel", "arbitrary")),
    )(x, p["w1"], p["b1"], p["w2"], p["b2"], ln_g, ln_b)


def bart_encoder_layer(hidden_states, attention_mask, params, num_heads):
    """Pallas implementation of BartEncoderLayer.forward (inference)."""
    # --- self-attention block: attention + dropout(id) + residual + LN ---
    hidden_states = attention_layernorm_pallas(
        hidden_states, attention_mask, params["attn"],
        params["ln1_g"], params["ln1_b"], num_heads)
    # --- feed-forward block: fc1 + GELU + dropout(id) + fc2 + residual + LN ---
    hidden_states = ffn_layernorm_pallas(
        hidden_states, params["ffn"], params["ln2_g"], params["ln2_b"])
    return hidden_states


# ---------------------------------------------------------------------------
# Deterministic parameter init + pure-JAX reference + demo
# ---------------------------------------------------------------------------

def init_params(key, d_model, ffn_dim):
    ks = jax.random.split(key, 16)
    s = 0.05

    def lin(kw, kb, fan_in, fan_out):
        # stored as (in, out) so kernels do x @ W + b
        w = jax.random.normal(kw, (fan_in, fan_out), jnp.float32) * s
        b = jax.random.normal(kb, (1, fan_out), jnp.float32) * s
        return w, b

    wq, bq = lin(ks[0], ks[1], d_model, d_model)
    wk, bk = lin(ks[2], ks[3], d_model, d_model)
    wv, bv = lin(ks[4], ks[5], d_model, d_model)
    wo, bo = lin(ks[6], ks[7], d_model, d_model)
    w1, b1 = lin(ks[8], ks[9], d_model, ffn_dim)
    w2, b2 = lin(ks[10], ks[11], ffn_dim, d_model)
    return {
        "attn": {"wq": wq, "bq": bq, "wk": wk, "bk": bk,
                 "wv": wv, "bv": bv, "wo": wo, "bo": bo},
        "ffn": {"w1": w1, "b1": b1, "w2": w2, "b2": b2},
        "ln1_g": 1.0 + 0.1 * jax.random.normal(ks[12], (1, d_model), jnp.float32),
        "ln1_b": 0.1 * jax.random.normal(ks[13], (1, d_model), jnp.float32),
        "ln2_g": 1.0 + 0.1 * jax.random.normal(ks[14], (1, d_model), jnp.float32),
        "ln2_b": 0.1 * jax.random.normal(ks[15], (1, d_model), jnp.float32),
    }


def reference_forward(x, mask, params, num_heads):
    """Pure-JAX reference mirroring the PyTorch forward (eval mode)."""
    B, S, D = x.shape
    hd = D // num_heads
    p = params["attn"]
    q = (x @ p["wq"] + p["bq"]) * (1.0 / math.sqrt(hd))
    k = x @ p["wk"] + p["bk"]
    v = x @ p["wv"] + p["bv"]
    q = q.reshape(B, S, num_heads, hd).transpose(0, 2, 1, 3)
    k = k.reshape(B, S, num_heads, hd).transpose(0, 2, 1, 3)
    v = v.reshape(B, S, num_heads, hd).transpose(0, 2, 1, 3)
    scores = jnp.einsum("bhqd,bhkd->bhqk", q, k) + mask[:, None, :, :]
    probs = jax.nn.softmax(scores, axis=-1)
    ctx = jnp.einsum("bhqk,bhkd->bhqd", probs, v)
    ctx = ctx.transpose(0, 2, 1, 3).reshape(B, S, D)
    attn_out = ctx @ p["wo"] + p["bo"]

    def ln(z, g, b):
        mu = jnp.mean(z, -1, keepdims=True)
        var = jnp.mean((z - mu) ** 2, -1, keepdims=True)
        return (z - mu) * jax.lax.rsqrt(var + _LN_EPS) * g + b

    h = ln(attn_out + x, params["ln1_g"], params["ln1_b"])
    f = params["ffn"]
    ff = jax.nn.gelu(h @ f["w1"] + f["b1"], approximate=True) @ f["w2"] + f["b2"]
    return ln(ff + h, params["ln2_g"], params["ln2_b"])


if __name__ == "__main__":
    B, S, D, H, FFN = 2, 8, 32, 4, 64  # batch, seq, d_model, heads, ffn_dim

    key = jax.random.PRNGKey(0)
    k_x, k_p = jax.random.split(key)
    x = jax.random.normal(k_x, (B, S, D), jnp.float32)
    attn_mask = jnp.zeros((B, S, S), jnp.float32)  # additive mask (no padding)
    params = init_params(k_p, D, FFN)

    layer = jax.jit(bart_encoder_layer, static_argnums=3)
    out = layer(x, attn_mask, params, H)
    out = jax.block_until_ready(out)

    ref = reference_forward(x, attn_mask, params, num_heads=H)
    assert out.shape == (B, S, D)
    # Tolerance accounts for the approx-EUP reciprocal in the softmax denom.
    assert jnp.allclose(out, ref, rtol=1e-3, atol=1e-3), "mismatch vs reference"

    print("KERNEL_OK")
</pallas_src>

<mosaic_0001>
module attributes {stable_mosaic.version = 11 : i64} {
  func.func @_attn_block_kernel(%arg0: i32, %arg1: i32, %arg2: memref<1x8x32xf32, #tpu.memory_space<vmem>>, %arg3: memref<1x8x8xf32, #tpu.memory_space<vmem>>, %arg4: memref<1x32x8xf32, #tpu.memory_space<vmem>>, %arg5: memref<1x1x8xf32, #tpu.memory_space<vmem>>, %arg6: memref<1x32x8xf32, #tpu.memory_space<vmem>>, %arg7: memref<1x1x8xf32, #tpu.memory_space<vmem>>, %arg8: memref<1x32x8xf32, #tpu.memory_space<vmem>>, %arg9: memref<1x1x8xf32, #tpu.memory_space<vmem>>, %arg10: memref<1x8x32xf32, #tpu.memory_space<vmem>>, %arg11: memref<1x32xf32, #tpu.memory_space<vmem>>, %arg12: memref<1x32xf32, #tpu.memory_space<vmem>>, %arg13: memref<1x32xf32, #tpu.memory_space<vmem>>, %arg14: memref<1x8x32xf32, #tpu.memory_space<vmem>>, %arg15: memref<8x32xf32, #tpu.memory_space<vmem>>) attributes {dimension_semantics = [#tpu.dimension_semantics<parallel>, #tpu.dimension_semantics<arbitrary>], iteration_bounds = array<i64: 2, 4>, scalar_prefetch = 0 : i64, scratch_operands = 1 : i64, tpu.core_type = #tpu.core_type<tc>, window_params = [{transform_indices = @transform_0, window_bounds = array<i64: 1, 8, 32>}, {transform_indices = @transform_1, window_bounds = array<i64: 1, 8, 8>}, {transform_indices = @transform_2, window_bounds = array<i64: 1, 32, 8>}, {transform_indices = @transform_3, window_bounds = array<i64: 1, 1, 8>}, {transform_indices = @transform_4, window_bounds = array<i64: 1, 32, 8>}, {transform_indices = @transform_5, window_bounds = array<i64: 1, 1, 8>}, {transform_indices = @transform_6, window_bounds = array<i64: 1, 32, 8>}, {transform_indices = @transform_7, window_bounds = array<i64: 1, 1, 8>}, {transform_indices = @transform_8, window_bounds = array<i64: 1, 8, 32>}, {pipeline_mode = #tpu.pipeline_mode<synchronous>, transform_indices = @transform_9, window_bounds = array<i64: 1, 32>}, {pipeline_mode = #tpu.pipeline_mode<synchronous>, transform_indices = @transform_10, window_bounds = array<i64: 1, 32>}, {pipeline_mode = #tpu.pipeline_mode<synchronous>, transform_indices = @transform_11, window_bounds = array<i64: 1, 32>}, {transform_indices = @transform_12, window_bounds = array<i64: 1, 8, 32>}]} {
    %c0 = arith.constant 0 : index
    %c0_0 = arith.constant 0 : index
    %c0_1 = arith.constant 0 : index
    %0 = vector.load %arg2[%c0, %c0_0, %c0_1] : memref<1x8x32xf32, #tpu.memory_space<vmem>>, vector<1x8x32xf32>
    %1 = vector.shape_cast %0 : vector<1x8x32xf32> to vector<8x32xf32>
    %c0_i32 = arith.constant 0 : i32
    %2 = arith.cmpi eq, %arg1, %c0_i32 : i32
    %3 = arith.extui %2 : i1 to i32
    %c0_i32_2 = arith.constant 0 : i32
    %4 = arith.cmpi ne, %3, %c0_i32_2 : i32
    scf.if %4 {
      %c0_40 = arith.constant 0 : index
      %c0_41 = arith.constant 0 : index
      %52 = vector.load %arg15[%c0_40, %c0_41] : memref<8x32xf32, #tpu.memory_space<vmem>>, vector<8x32xf32>
      tpu.vector_store %arg15[%c0_40, %c0_41], %1 {strides = array<i32>} : memref<8x32xf32, #tpu.memory_space<vmem>>, vector<8x32xf32>,
    } else {
    }
    %c0_3 = arith.constant 0 : index
    %c0_4 = arith.constant 0 : index
    %c0_5 = arith.constant 0 : index
    %5 = vector.load %arg4[%c0_3, %c0_4, %c0_5] : memref<1x32x8xf32, #tpu.memory_space<vmem>>, vector<1x32x8xf32>
    %6 = vector.shape_cast %5 : vector<1x32x8xf32> to vector<32x8xf32>
    %cst = arith.constant dense<0.000000e+00> : vector<8x8xf32>
    %7 = tpu.matmul %1, %6, %cst {dimension_numbers = #tpu.dot_dimension_numbers<[1], [0], [0], [1], [0, 0, 1, 1], [], []>} : vector<8x32xf32>, vector<32x8xf32>, vector<8x8xf32> -> vector<8x8xf32>
    %c0_6 = arith.constant 0 : index
    %c0_7 = arith.constant 0 : index
    %c0_8 = arith.constant 0 : index
    %8 = vector.load %arg5[%c0_6, %c0_7, %c0_8] : memref<1x1x8xf32, #tpu.memory_space<vmem>>, vector<1x1x8xf32>
    %9 = vector.shape_cast %8 : vector<1x1x8xf32> to vector<1x8xf32>
    %10 = vector.broadcast %9 : vector<1x8xf32> to vector<8x8xf32>
    %11 = arith.addf %7, %10 : vector<8x8xf32>
    %cst_9 = arith.constant 0.353553385 : f32
    %12 = vector.broadcast %cst_9 : f32 to vector<8x8xf32>
    %13 = arith.mulf %11, %12 : vector<8x8xf32>
    %c0_10 = arith.constant 0 : index
    %c0_11 = arith.constant 0 : index
    %c0_12 = arith.constant 0 : index
    %14 = vector.load %arg6[%c0_10, %c0_11, %c0_12] : memref<1x32x8xf32, #tpu.memory_space<vmem>>, vector<1x32x8xf32>
    %15 = vector.shape_cast %14 : vector<1x32x8xf32> to vector<32x8xf32>
    %cst_13 = arith.constant dense<0.000000e+00> : vector<8x8xf32>
    %16 = tpu.matmul %1, %15, %cst_13 {dimension_numbers = #tpu.dot_dimension_numbers<[1], [0], [0], [1], [0, 0, 1, 1], [], []>} : vector<8x32xf32>, vector<32x8xf32>, vector<8x8xf32> -> vector<8x8xf32>
    %c0_14 = arith.constant 0 : index
    %c0_15 = arith.constant 0 : index
    %c0_16 = arith.constant 0 : index
    %17 = vector.load %arg7[%c0_14, %c0_15, %c0_16] : memref<1x1x8xf32, #tpu.memory_space<vmem>>, vector<1x1x8xf32>
    %18 = vector.shape_cast %17 : vector<1x1x8xf32> to vector<1x8xf32>
    %19 = vector.broadcast %18 : vector<1x8xf32> to vector<8x8xf32>
    %20 = arith.addf %16, %19 : vector<8x8xf32>
    %c0_17 = arith.constant 0 : index
    %c0_18 = arith.constant 0 : index
    %c0_19 = arith.constant 0 : index
    %21 = vector.load %arg8[%c0_17, %c0_18, %c0_19] : memref<1x32x8xf32, #tpu.memory_space<vmem>>, vector<1x32x8xf32>
    %22 = vector.shape_cast %21 : vector<1x32x8xf32> to vector<32x8xf32>
    %cst_20 = arith.constant dense<0.000000e+00> : vector<8x8xf32>
    %23 = tpu.matmul %1, %22, %cst_20 {dimension_numbers = #tpu.dot_dimension_numbers<[1], [0], [0], [1], [0, 0, 1, 1], [], []>} : vector<8x32xf32>, vector<32x8xf32>, vector<8x8xf32> -> vector<8x8xf32>
    %c0_21 = arith.constant 0 : index
    %c0_22 = arith.constant 0 : index
    %c0_23 = arith.constant 0 : index
    %24 = vector.load %arg9[%c0_21, %c0_22, %c0_23] : memref<1x1x8xf32, #tpu.memory_space<vmem>>, vector<1x1x8xf32>
    %25 = vector.shape_cast %24 : vector<1x1x8xf32> to vector<1x8xf32>
    %26 = vector.broadcast %25 : vector<1x8xf32> to vector<8x8xf32>
    %27 = arith.addf %23, %26 : vector<8x8xf32>
    %cst_24 = arith.constant dense<0.000000e+00> : vector<8x8xf32>
    %28 = tpu.matmul %13, %20, %cst_24 {dimension_numbers = #tpu.dot_dimension_numbers<[1], [1], [0], [0], [0, 0, 1, 0], [], []>} : vector<8x8xf32>, vector<8x8xf32>, vector<8x8xf32> -> vector<8x8xf32>
    %c0_25 = arith.constant 0 : index
    %c0_26 = arith.constant 0 : index
    %c0_27 = arith.constant 0 : index
    %29 = vector.load %arg3[%c0_25, %c0_26, %c0_27] : memref<1x8x8xf32, #tpu.memory_space<vmem>>, vector<1x8x8xf32>
    %30 = vector.shape_cast %29 : vector<1x8x8xf32> to vector<8x8xf32>
    %31 = arith.addf %28, %30 : vector<8x8xf32>
    %cst_28 = arith.constant dense<0xFF800000> : vector<8xf32>
    %32 = vector.multi_reduction <maximumf>, %31, %cst_28 [1] : vector<8x8xf32> to vector<8xf32>
    %33 = vector.shape_cast %32 : vector<8xf32> to vector<8x1xf32>
    %34 = vector.broadcast %33 : vector<8x1xf32> to vector<8x8xf32>
    %35 = arith.subf %31, %34 : vector<8x8xf32>
    %36 = math.exp %35 : vector<8x8xf32>
    %cst_29 = arith.constant dense<0.000000e+00> : vector<8xf32>
    %37 = vector.multi_reduction <add>, %36, %cst_29 [1] : vector<8x8xf32> to vector<8xf32>
    %38 = vector.shape_cast %37 : vector<8xf32> to vector<8x1xf32>
    %39 = tpu.reciprocal %38 {approx = true} : vector<8x1xf32> -> vector<8x1xf32>
    %40 = vector.broadcast %39 : vector<8x1xf32> to vector<8x8xf32>
    %41 = arith.mulf %36, %40 : vector<8x8xf32>
    %cst_30 = arith.constant dense<0.000000e+00> : vector<8x8xf32>
    %42 = tpu.matmul %41, %27, %cst_30 {dimension_numbers = #tpu.dot_dimension_numbers<[1], [0], [0], [1], [0, 0, 1, 1], [], []>} : vector<8x8xf32>, vector<8x8xf32>, vector<8x8xf32> -> vector<8x8xf32>
    %c0_31 = arith.constant 0 : index
    %c0_32 = arith.constant 0 : index
    %43 = vector.load %arg15[%c0_31, %c0_32] : memref<8x32xf32, #tpu.memory_space<vmem>>, vector<8x32xf32>
    %c0_33 = arith.constant 0 : index
    %c0_34 = arith.constant 0 : index
    %c0_35 = arith.constant 0 : index
    %44 = vector.load %arg10[%c0_33, %c0_34, %c0_35] : memref<1x8x32xf32, #tpu.memory_space<vmem>>, vector<1x8x32xf32>
    %45 = vector.shape_cast %44 : vector<1x8x32xf32> to vector<8x32xf32>
    %cst_36 = arith.constant dense<0.000000e+00> : vector<8x32xf32>
    %46 = tpu.matmul %42, %45, %cst_36 {dimension_numbers = #tpu.dot_dimension_numbers<[1], [0], [0], [1], [0, 0, 1, 1], [], []>} : vector<8x8xf32>, vector<8x32xf32>, vector<8x32xf32> -> vector<8x32xf32>
    %47 = arith.addf %43, %46 : vector<8x32xf32>
    %c0_37 = arith.constant 0 : index
    %c0_38 = arith.constant 0 : index
    %48 = vector.load %arg15[%c0_37, %c0_38] : memref<8x32xf32, #tpu.memory_space<vmem>>, vector<8x32xf32>
    tpu.vector_store %arg15[%c0_37, %c0_38], %47 {strides = array<i32>} : memref<8x32xf32, #tpu.memory_space<vmem>>, vector<8x32xf32>,
    %c3_i32 = arith.constant 3 : i32
    %49 = arith.cmpi eq, %arg1, %c3_i32 : i32
    %50 = arith.extui %49 : i1 to i32
    %c0_i32_39 = arith.constant 0 : i32
    %51 = arith.cmpi ne, %50, %c0_i32_39 : i32
    scf.if %51 {
      %c0_40 = arith.constant 0 : index
      %c0_41 = arith.constant 0 : index
      %52 = vector.load %arg15[%c0_40, %c0_41] : memref<8x32xf32, #tpu.memory_space<vmem>>, vector<8x32xf32>
      %c0_42 = arith.constant 0 : index
      %c0_43 = arith.constant 0 : index
      %53 = vector.load %arg11[%c0_42, %c0_43] : memref<1x32xf32, #tpu.memory_space<vmem>>, vector<1x32xf32>
      %54 = vector.broadcast %53 : vector<1x32xf32> to vector<8x32xf32>
      %55 = arith.addf %52, %54 : vector<8x32xf32>
      %cst_44 = arith.constant dense<0.000000e+00> : vector<8xf32>
      %56 = vector.multi_reduction <add>, %55, %cst_44 [1] : vector<8x32xf32> to vector<8xf32>
      %57 = vector.shape_cast %56 : vector<8xf32> to vector<8x1xf32>
      %cst_45 = arith.constant 3.200000e+01 : f32
      %58 = vector.broadcast %cst_45 : f32 to vector<8x1xf32>
      %59 = arith.divf %57, %58 : vector<8x1xf32>
      %60 = vector.broadcast %59 : vector<8x1xf32> to vector<8x32xf32>
      %61 = arith.subf %55, %60 : vector<8x32xf32>
      %62 = arith.mulf %61, %61 : vector<8x32xf32>
      %cst_46 = arith.constant dense<0.000000e+00> : vector<8xf32>
      %63 = vector.multi_reduction <add>, %62, %cst_46 [1] : vector<8x32xf32> to vector<8xf32>
      %64 = vector.shape_cast %63 : vector<8xf32> to vector<8x1xf32>
      %cst_47 = arith.constant 3.200000e+01 : f32
      %65 = vector.broadcast %cst_47 : f32 to vector<8x1xf32>
      %66 = arith.divf %64, %65 : vector<8x1xf32>
      %cst_48 = arith.constant 9.99999974E-6 : f32
      %67 = vector.broadcast %cst_48 : f32 to vector<8x1xf32>
      %68 = arith.addf %66, %67 : vector<8x1xf32>
      %69 = math.rsqrt %68 : vector<8x1xf32>
      %70 = vector.broadcast %69 : vector<8x1xf32> to vector<8x32xf32>
      %71 = arith.mulf %61, %70 : vector<8x32xf32>
      %c0_49 = arith.constant 0 : index
      %c0_50 = arith.constant 0 : index
      %72 = vector.load %arg12[%c0_49, %c0_50] : memref<1x32xf32, #tpu.memory_space<vmem>>, vector<1x32xf32>
      %73 = vector.broadcast %72 : vector<1x32xf32> to vector<8x32xf32>
      %74 = arith.mulf %71, %73 : vector<8x32xf32>
      %c0_51 = arith.constant 0 : index
      %c0_52 = arith.constant 0 : index
      %75 = vector.load %arg13[%c0_51, %c0_52] : memref<1x32xf32, #tpu.memory_space<vmem>>, vector<1x32xf32>
      %76 = vector.broadcast %75 : vector<1x32xf32> to vector<8x32xf32>
      %77 = arith.addf %74, %76 : vector<8x32xf32>
      %c0_53 = arith.constant 0 : index
      %c0_54 = arith.constant 0 : index
      %c0_55 = arith.constant 0 : index
      %78 = vector.load %arg14[%c0_53, %c0_54, %c0_55] : memref<1x8x32xf32, #tpu.memory_space<vmem>>, vector<1x8x32xf32>
      %79 = vector.shape_cast %78 : vector<1x8x32xf32> to vector<8x32xf32>
      %80 = vector.shape_cast %77 : vector<8x32xf32> to vector<1x8x32xf32>
      tpu.vector_store %arg14[%c0_53, %c0_54, %c0_55], %80 {strides = array<i32>} : memref<1x8x32xf32, #tpu.memory_space<vmem>>, vector<1x8x32xf32>,
    } else {
    }
    return
  }
  func.func @transform_0(%arg0: i32, %arg1: i32) -> (i32, i32, i32) {
    %c0_i32 = arith.constant 0 : i32
    %c0_i32_0 = arith.constant 0 : i32
    %c0_i32_1 = arith.constant 0 : i32
    return %arg0, %c0_i32, %c0_i32_0 : i32, i32, i32
  }
  func.func @transform_1(%arg0: i32, %arg1: i32) -> (i32, i32, i32) {
    %c0_i32 = arith.constant 0 : i32
    %c0_i32_0 = arith.constant 0 : i32
    %c0_i32_1 = arith.constant 0 : i32
    return %arg0, %c0_i32, %c0_i32_0 : i32, i32, i32
  }
  func.func @transform_2(%arg0: i32, %arg1: i32) -> (i32, i32, i32) {
    %c0_i32 = arith.constant 0 : i32
    %c0_i32_0 = arith.constant 0 : i32
    %c0_i32_1 = arith.constant 0 : i32
    return %arg1, %c0_i32, %c0_i32_0 : i32, i32, i32
  }
  func.func @transform_3(%arg0: i32, %arg1: i32) -> (i32, i32, i32) {
    %c0_i32 = arith.constant 0 : i32
    %c0_i32_0 = arith.constant 0 : i32
    %c0_i32_1 = arith.constant 0 : i32
    return %arg1, %c0_i32, %c0_i32_0 : i32, i32, i32
  }
  func.func @transform_4(%arg0: i32, %arg1: i32) -> (i32, i32, i32) {
    %c0_i32 = arith.constant 0 : i32
    %c0_i32_0 = arith.constant 0 : i32
    %c0_i32_1 = arith.constant 0 : i32
    return %arg1, %c0_i32, %c0_i32_0 : i32, i32, i32
  }
  func.func @transform_5(%arg0: i32, %arg1: i32) -> (i32, i32, i32) {
    %c0_i32 = arith.constant 0 : i32
    %c0_i32_0 = arith.constant 0 : i32
    %c0_i32_1 = arith.constant 0 : i32
    return %arg1, %c0_i32, %c0_i32_0 : i32, i32, i32
  }
  func.func @transform_6(%arg0: i32, %arg1: i32) -> (i32, i32, i32) {
    %c0_i32 = arith.constant 0 : i32
    %c0_i32_0 = arith.constant 0 : i32
    %c0_i32_1 = arith.constant 0 : i32
    return %arg1, %c0_i32, %c0_i32_0 : i32, i32, i32
  }
  func.func @transform_7(%arg0: i32, %arg1: i32) -> (i32, i32, i32) {
    %c0_i32 = arith.constant 0 : i32
    %c0_i32_0 = arith.constant 0 : i32
    %c0_i32_1 = arith.constant 0 : i32
    return %arg1, %c0_i32, %c0_i32_0 : i32, i32, i32
  }
  func.func @transform_8(%arg0: i32, %arg1: i32) -> (i32, i32, i32) {
    %c0_i32 = arith.constant 0 : i32
    %c0_i32_0 = arith.constant 0 : i32
    %c0_i32_1 = arith.constant 0 : i32
    return %arg1, %c0_i32, %c0_i32_0 : i32, i32, i32
  }
  func.func @transform_9(%arg0: i32, %arg1: i32) -> (i32, i32) {
    %c0_i32 = arith.constant 0 : i32
    %c0_i32_0 = arith.constant 0 : i32
    %c0_i32_1 = arith.constant 0 : i32
    return %c0_i32, %c0_i32_0 : i32, i32
  }
  func.func @transform_10(%arg0: i32, %arg1: i32) -> (i32, i32) {
    %c0_i32 = arith.constant 0 : i32
    %c0_i32_0 = arith.constant 0 : i32
    %c0_i32_1 = arith.constant 0 : i32
    return %c0_i32, %c0_i32_0 : i32, i32
  }
  func.func @transform_11(%arg0: i32, %arg1: i32) -> (i32, i32) {
    %c0_i32 = arith.constant 0 : i32
    %c0_i32_0 = arith.constant 0 : i32
    %c0_i32_1 = arith.constant 0 : i32
    return %c0_i32, %c0_i32_0 : i32, i32
  }
  func.func @transform_12(%arg0: i32, %arg1: i32) -> (i32, i32, i32) {
    %c0_i32 = arith.constant 0 : i32
    %c0_i32_0 = arith.constant 0 : i32
    %c0_i32_1 = arith.constant 0 : i32
    return %arg0, %c0_i32, %c0_i32_0 : i32, i32, i32
  }
}

module attributes {stable_mosaic.version = 11 : i64} {
  func.func @_ffn_block_kernel(%arg0: i32, %arg1: i32, %arg2: memref<1x8x32xf32, #tpu.memory_space<vmem>>, %arg3: memref<32x64xf32, #tpu.memory_space<vmem>>, %arg4: memref<1x64xf32, #tpu.memory_space<vmem>>, %arg5: memref<64x32xf32, #tpu.memory_space<vmem>>, %arg6: memref<1x32xf32, #tpu.memory_space<vmem>>, %arg7: memref<1x32xf32, #tpu.memory_space<vmem>>, %arg8: memref<1x32xf32, #tpu.memory_space<vmem>>, %arg9: memref<1x8x32xf32, #tpu.memory_space<vmem>>, %arg10: memref<8x32xf32, #tpu.memory_space<vmem>>) attributes {dimension_semantics = [#tpu.dimension_semantics<parallel>, #tpu.dimension_semantics<arbitrary>], iteration_bounds = array<i64: 2, 1>, scalar_prefetch = 0 : i64, scratch_operands = 1 : i64, tpu.core_type = #tpu.core_type<tc>, window_params = [{transform_indices = @transform_0, window_bounds = array<i64: 1, 8, 32>}, {transform_indices = @transform_1, window_bounds = array<i64: 32, 64>}, {transform_indices = @transform_2, window_bounds = array<i64: 1, 64>}, {transform_indices = @transform_3, window_bounds = array<i64: 64, 32>}, {pipeline_mode = #tpu.pipeline_mode<synchronous>, transform_indices = @transform_4, window_bounds = array<i64: 1, 32>}, {pipeline_mode = #tpu.pipeline_mode<synchronous>, transform_indices = @transform_5, window_bounds = array<i64: 1, 32>}, {pipeline_mode = #tpu.pipeline_mode<synchronous>, transform_indices = @transform_6, window_bounds = array<i64: 1, 32>}, {transform_indices = @transform_7, window_bounds = array<i64: 1, 8, 32>}]} {
    %c0 = arith.constant 0 : index
    %c0_0 = arith.constant 0 : index
    %c0_1 = arith.constant 0 : index
    %0 = vector.load %arg2[%c0, %c0_0, %c0_1] : memref<1x8x32xf32, #tpu.memory_space<vmem>>, vector<1x8x32xf32>
    %1 = vector.shape_cast %0 : vector<1x8x32xf32> to vector<8x32xf32>
    %c0_i32 = arith.constant 0 : i32
    %2 = arith.cmpi eq, %arg1, %c0_i32 : i32
    %3 = arith.extui %2 : i1 to i32
    %c0_i32_2 = arith.constant 0 : i32
    %4 = arith.cmpi ne, %3, %c0_i32_2 : i32
    scf.if %4 {
      %c0_20 = arith.constant 0 : index
      %c0_21 = arith.constant 0 : index
      %31 = vector.load %arg10[%c0_20, %c0_21] : memref<8x32xf32, #tpu.memory_space<vmem>>, vector<8x32xf32>
      tpu.vector_store %arg10[%c0_20, %c0_21], %1 {strides = array<i32>} : memref<8x32xf32, #tpu.memory_space<vmem>>, vector<8x32xf32>,
    } else {
    }
    %c0_3 = arith.constant 0 : index
    %c0_4 = arith.constant 0 : index
    %5 = vector.load %arg3[%c0_3, %c0_4] : memref<32x64xf32, #tpu.memory_space<vmem>>, vector<32x64xf32>
    %cst = arith.constant dense<0.000000e+00> : vector<8x64xf32>
    %6 = tpu.matmul %1, %5, %cst {dimension_numbers = #tpu.dot_dimension_numbers<[1], [0], [0], [1], [0, 0, 1, 1], [], []>} : vector<8x32xf32>, vector<32x64xf32>, vector<8x64xf32> -> vector<8x64xf32>
    %c0_5 = arith.constant 0 : index
    %c0_6 = arith.constant 0 : index
    %7 = vector.load %arg4[%c0_5, %c0_6] : memref<1x64xf32, #tpu.memory_space<vmem>>, vector<1x64xf32>
    %8 = vector.broadcast %7 : vector<1x64xf32> to vector<8x64xf32>
    %9 = arith.addf %6, %8 : vector<8x64xf32>
    %10 = arith.mulf %9, %9 : vector<8x64xf32>
    %11 = arith.mulf %9, %10 : vector<8x64xf32>
    %cst_7 = arith.constant 4.471500e-02 : f32
    %12 = vector.broadcast %cst_7 : f32 to vector<8x64xf32>
    %13 = arith.mulf %12, %11 : vector<8x64xf32>
    %14 = arith.addf %9, %13 : vector<8x64xf32>
    %cst_8 = arith.constant 0.797884583 : f32
    %15 = vector.broadcast %cst_8 : f32 to vector<8x64xf32>
    %16 = arith.mulf %15, %14 : vector<8x64xf32>
    %17 = math.tanh %16 : vector<8x64xf32>
    %cst_9 = arith.constant 1.000000e+00 : f32
    %18 = vector.broadcast %cst_9 : f32 to vector<8x64xf32>
    %19 = arith.addf %18, %17 : vector<8x64xf32>
    %cst_10 = arith.constant 5.000000e-01 : f32
    %20 = vector.broadcast %cst_10 : f32 to vector<8x64xf32>
    %21 = arith.mulf %20, %19 : vector<8x64xf32>
    %22 = arith.mulf %9, %21 : vector<8x64xf32>
    %c0_11 = arith.constant 0 : index
    %c0_12 = arith.constant 0 : index
    %23 = vector.load %arg10[%c0_11, %c0_12] : memref<8x32xf32, #tpu.memory_space<vmem>>, vector<8x32xf32>
    %c0_13 = arith.constant 0 : index
    %c0_14 = arith.constant 0 : index
    %24 = vector.load %arg5[%c0_13, %c0_14] : memref<64x32xf32, #tpu.memory_space<vmem>>, vector<64x32xf32>
    %cst_15 = arith.constant dense<0.000000e+00> : vector<8x32xf32>
    %25 = tpu.matmul %22, %24, %cst_15 {dimension_numbers = #tpu.dot_dimension_numbers<[1], [0], [0], [1], [0, 0, 1, 1], [], []>} : vector<8x64xf32>, vector<64x32xf32>, vector<8x32xf32> -> vector<8x32xf32>
    %26 = arith.addf %23, %25 : vector<8x32xf32>
    %c0_16 = arith.constant 0 : index
    %c0_17 = arith.constant 0 : index
    %27 = vector.load %arg10[%c0_16, %c0_17] : memref<8x32xf32, #tpu.memory_space<vmem>>, vector<8x32xf32>
    tpu.vector_store %arg10[%c0_16, %c0_17], %26 {strides = array<i32>} : memref<8x32xf32, #tpu.memory_space<vmem>>, vector<8x32xf32>,
    %c0_i32_18 = arith.constant 0 : i32
    %28 = arith.cmpi eq, %arg1, %c0_i32_18 : i32
    %29 = arith.extui %28 : i1 to i32
    %c0_i32_19 = arith.constant 0 : i32
    %30 = arith.cmpi ne, %29, %c0_i32_19 : i32
    scf.if %30 {
      %c0_20 = arith.constant 0 : index
      %c0_21 = arith.constant 0 : index
      %31 = vector.load %arg10[%c0_20, %c0_21] : memref<8x32xf32, #tpu.memory_space<vmem>>, vector<8x32xf32>
      %c0_22 = arith.constant 0 : index
      %c0_23 = arith.constant 0 : index
      %32 = vector.load %arg6[%c0_22, %c0_23] : memref<1x32xf32, #tpu.memory_space<vmem>>, vector<1x32xf32>
      %33 = vector.broadcast %32 : vector<1x32xf32> to vector<8x32xf32>
      %34 = arith.addf %31, %33 : vector<8x32xf32>
      %cst_24 = arith.constant dense<0.000000e+00> : vector<8xf32>
      %35 = vector.multi_reduction <add>, %34, %cst_24 [1] : vector<8x32xf32> to vector<8xf32>
      %36 = vector.shape_cast %35 : vector<8xf32> to vector<8x1xf32>
      %cst_25 = arith.constant 3.200000e+01 : f32
      %37 = vector.broadcast %cst_25 : f32 to vector<8x1xf32>
      %38 = arith.divf %36, %37 : vector<8x1xf32>
      %39 = vector.broadcast %38 : vector<8x1xf32> to vector<8x32xf32>
      %40 = arith.subf %34, %39 : vector<8x32xf32>
      %41 = arith.mulf %40, %40 : vector<8x32xf32>
      %cst_26 = arith.constant dense<0.000000e+00> : vector<8xf32>
      %42 = vector.multi_reduction <add>, %41, %cst_26 [1] : vector<8x32xf32> to vector<8xf32>
      %43 = vector.shape_cast %42 : vector<8xf32> to vector<8x1xf32>
      %cst_27 = arith.constant 3.200000e+01 : f32
      %44 = vector.broadcast %cst_27 : f32 to vector<8x1xf32>
      %45 = arith.divf %43, %44 : vector<8x1xf32>
      %cst_28 = arith.constant 9.99999974E-6 : f32
      %46 = vector.broadcast %cst_28 : f32 to vector<8x1xf32>
      %47 = arith.addf %45, %46 : vector<8x1xf32>
      %48 = math.rsqrt %47 : vector<8x1xf32>
      %49 = vector.broadcast %48 : vector<8x1xf32> to vector<8x32xf32>
      %50 = arith.mulf %40, %49 : vector<8x32xf32>
      %c0_29 = arith.constant 0 : index
      %c0_30 = arith.constant 0 : index
      %51 = vector.load %arg7[%c0_29, %c0_30] : memref<1x32xf32, #tpu.memory_space<vmem>>, vector<1x32xf32>
      %52 = vector.broadcast %51 : vector<1x32xf32> to vector<8x32xf32>
      %53 = arith.mulf %50, %52 : vector<8x32xf32>
      %c0_31 = arith.constant 0 : index
      %c0_32 = arith.constant 0 : index
      %54 = vector.load %arg8[%c0_31, %c0_32] : memref<1x32xf32, #tpu.memory_space<vmem>>, vector<1x32xf32>
      %55 = vector.broadcast %54 : vector<1x32xf32> to vector<8x32xf32>
      %56 = arith.addf %53, %55 : vector<8x32xf32>
      %c0_33 = arith.constant 0 : index
      %c0_34 = arith.constant 0 : index
      %c0_35 = arith.constant 0 : index
      %57 = vector.load %arg9[%c0_33, %c0_34, %c0_35] : memref<1x8x32xf32, #tpu.memory_space<vmem>>, vector<1x8x32xf32>
      %58 = vector.shape_cast %57 : vector<1x8x32xf32> to vector<8x32xf32>
      %59 = vector.shape_cast %56 : vector<8x32xf32> to vector<1x8x32xf32>
      tpu.vector_store %arg9[%c0_33, %c0_34, %c0_35], %59 {strides = array<i32>} : memref<1x8x32xf32, #tpu.memory_space<vmem>>, vector<1x8x32xf32>,
    } else {
    }
    return
  }
  func.func @transform_0(%arg0: i32, %arg1: i32) -> (i32, i32, i32) {
    %c0_i32 = arith.constant 0 : i32
    %c0_i32_0 = arith.constant 0 : i32
    %c0_i32_1 = arith.constant 0 : i32
    return %arg0, %c0_i32, %c0_i32_0 : i32, i32, i32
  }
  func.func @transform_1(%arg0: i32, %arg1: i32) -> (i32, i32) {
    %c0_i32 = arith.constant 0 : i32
    %c0_i32_0 = arith.constant 0 : i32
    return %c0_i32, %arg1 : i32, i32
  }
  func.func @transform_2(%arg0: i32, %arg1: i32) -> (i32, i32) {
    %c0_i32 = arith.constant 0 : i32
    %c0_i32_0 = arith.constant 0 : i32
    return %c0_i32, %arg1 : i32, i32
  }
  func.func @transform_3(%arg0: i32, %arg1: i32) -> (i32, i32) {
    %c0_i32 = arith.constant 0 : i32
    %c0_i32_0 = arith.constant 0 : i32
    return %arg1, %c0_i32 : i32, i32
  }
  func.func @transform_4(%arg0: i32, %arg1: i32) -> (i32, i32) {
    %c0_i32 = arith.constant 0 : i32
    %c0_i32_0 = arith.constant 0 : i32
    %c0_i32_1 = arith.constant 0 : i32
    return %c0_i32, %c0_i32_0 : i32, i32
  }
  func.func @transform_5(%arg0: i32, %arg1: i32) -> (i32, i32) {
    %c0_i32 = arith.constant 0 : i32
    %c0_i32_0 = arith.constant 0 : i32
    %c0_i32_1 = arith.constant 0 : i32
    return %c0_i32, %c0_i32_0 : i32, i32
  }
  func.func @transform_6(%arg0: i32, %arg1: i32) -> (i32, i32) {
    %c0_i32 = arith.constant 0 : i32
    %c0_i32_0 = arith.constant 0 : i32
    %c0_i32_1 = arith.constant 0 : i32
    return %c0_i32, %c0_i32_0 : i32, i32
  }
  func.func @transform_7(%arg0: i32, %arg1: i32) -> (i32, i32, i32) {
    %c0_i32 = arith.constant 0 : i32
    %c0_i32_0 = arith.constant 0 : i32
    %c0_i32_1 = arith.constant 0 : i32
    return %arg0, %c0_i32, %c0_i32_0 : i32, i32, i32
  }
}

</mosaic_0001>

<llo_original>
// kernel: bart_encoder_layer.2
$region0: #{bart_encoder_layer.2}
  #allocation0 [shape = 'u32[]', space=smem, size = 0x4, offset = 0x4, fixed_abs, tag = 'smem constant byte address 0x4 - core index']
  #allocation1 [shape = 'u32[144,128]{1,0:T(1,128)}', space=vmem, size = 0x12000, scoped, tag = 'internal scratch']
  #allocation2 [shape = 'f32[8,32]{1,0:T(8,128)}', space=vmem, size = 0x1000, scoped, tag = 'scratch operand']
  %s0 = inlined_call_operand.vmem [shape: f32[2,8,32], index: 0, kind: input, shape index: {}]
  %s1 = inlined_call_operand.vmem [shape: f32[2,8,8], index: 1, kind: input, shape index: {}]
  %s2 = inlined_call_operand.vmem [shape: f32[4,32,8], index: 2, kind: input, shape index: {}]
  %s3 = inlined_call_operand.vmem [shape: f32[4,1,8], index: 3, kind: input, shape index: {}]
  %s4 = inlined_call_operand.vmem [shape: f32[4,32,8], index: 4, kind: input, shape index: {}]
  %s5 = inlined_call_operand.vmem [shape: f32[4,1,8], index: 5, kind: input, shape index: {}]
  %s6 = inlined_call_operand.vmem [shape: f32[4,32,8], index: 6, kind: input, shape index: {}]
  %s7 = inlined_call_operand.vmem [shape: f32[4,1,8], index: 7, kind: input, shape index: {}]
  %s8 = inlined_call_operand.vmem [shape: f32[4,8,32], index: 8, kind: input, shape index: {}]
  %s9 = inlined_call_operand.vmem [shape: f32[1,32], index: 9, kind: input, shape index: {}]
  %s10 = inlined_call_operand.vmem [shape: f32[1,32], index: 10, kind: input, shape index: {}]
  %s11 = inlined_call_operand.vmem [shape: f32[1,32], index: 11, kind: input, shape index: {}]
  %s12 = inlined_call_operand.vmem [shape: f32[2,8,32], index: 12, kind: output, shape index: {}]
  %s13 = sld [smem:[#allocation0]]
  $region89: #{bart_encoder_layer.2} parent=0
    _
  %s15 = ssub.s32 1, %s13
  %s16 = scalar_select 0, %s15, %s13
  loop: start=0, step=1, limit=10
  $region2: #{bart_encoder_layer.2} parent=0 // loop_pre_header
    _
  $region3: #{bart_encoder_layer.2} parent=0 // loop_header
    %s18 = sphi 0, %s22
    %p19 = scmp.ge.s32.totalorder %s18, 10
    %s25 = sphi 0, %s37
    %s26 = sphi 0, %s33
    %s27 = sphi 0, %s25
    %s28 = sphi 0, %s26
    %s29 = sphi 0, %s27
    %s30 = sphi 0, %s28
    %s40 = sphi 0, %s42
    %s43 = sphi 0, %s40
    %s44 = sphi 0, %s43
    %s60 = sphi 0, %s44
    %s66 = sphi 0, %s68
    %s69 = sphi 0, %s66
    %s70 = sphi 0, %s69
    %s86 = sphi 0, %s70
    %s92 = sphi 0, %s94
    %s95 = sphi 0, %s92
    %s96 = sphi 0, %s95
    %s112 = sphi 0, %s96
    %s118 = sphi 0, %s120
    %s121 = sphi 0, %s118
    %s122 = sphi 0, %s121
    %s138 = sphi 0, %s122
    %s144 = sphi 0, %s146
    %s147 = sphi 0, %s144
    %s148 = sphi 0, %s147
    %s164 = sphi 0, %s148
    %s170 = sphi 0, %s172
    %s173 = sphi 0, %s170
    %s174 = sphi 0, %s173
    %s190 = sphi 0, %s174
    %s196 = sphi 0, %s198
    %s199 = sphi 0, %s196
    %s200 = sphi 0, %s199
    %s216 = sphi 0, %s200
    %s222 = sphi 0, %s224
    %s225 = sphi 0, %s222
    %s226 = sphi 0, %s225
    %s242 = sphi 0, %s226
    %s248 = sphi 0, %s250
    %s251 = sphi 0, %s248
    %s252 = sphi 0, %s251
    %s268 = sphi 0, %s252
    %s272 = sphi 0, %s272
    %s274 = sphi 0, %s272
    %s275 = sphi 0, %s274
    %s289 = sphi 0, %s275
    %s293 = sphi 0, %s293
    %s295 = sphi 0, %s293
    %s296 = sphi 0, %s295
    %s310 = sphi 0, %s296
    %s314 = sphi 0, %s314
    %s316 = sphi 0, %s314
    %s317 = sphi 0, %s316
    %s331 = sphi 0, %s317
    %s337 = sphi 0, %s339
    %s340 = sphi 0, %s337
    %s341 = sphi 0, %s340
    %s357 = sphi 0, %s341
  $region4: #{bart_encoder_layer.2} parent=0 // loop_header_branch
    %21 = sbr.rel (%p19) target = $region8
  $region5: #{bart_encoder_layer.2} parent=0 // loop_body
    %s23 = ssub.s32 %s18, 1
    %s24 = ssub.s32 %s18, 2
    %s31 = sadd.s32 1, %s26
    %p32 = scmp.ge.s32.totalorder %s31, 4
    %s33 = scalar_select %p32, 0, %s31
    %s34 = sadd.s32 1, %s25
    %s35 = scalar_select %p32, %s34, %s25
    %p36 = scmp.ge.s32.totalorder %s35, 2
    %s37 = scalar_select %p36, 0, %s35
    %s38 = ssub.s32 %s25, %s37
    %p39 = scmp.eq.s32.totalorder %s38, 0
    %s41 = sadd.s32 %s40, 1
    %s42 = scalar_select %p39, %s40, %s41
    %p45 = pneg %p39
    %p46 = scmp.eq.s32.totalorder %s18, 7
    %p47 = por %p45, %p46
    %p48 = scmp.ne.s32.totalorder %s40, %s43
    %p49 = scmp.eq.s32.totalorder %s18, 0
    %p50 = por %p48, %p49
    %p51 = scmp.ne.s32.totalorder %s40, %s43
    %p52 = scmp.eq.s32.totalorder %s23, 7
    %p53 = por %p51, %p52
    %p54 = scmp.ne.s32.totalorder %s43, %s44
    %p55 = scmp.eq.s32.totalorder %s23, 0
    %p56 = por %p54, %p55
    %p57 = scmp.ne.s32.totalorder %s43, %s44
    %p58 = scmp.eq.s32.totalorder %s24, 7
    %p59 = por %p57, %p58
    %p61 = scmp.ne.s32.totalorder %s44, %s60
    %p62 = scmp.eq.s32.totalorder %s24, 0
    %p63 = por %p61, %p62
    %s64 = ssub.s32 %s25, %s37
    %p65 = scmp.eq.s32.totalorder %s64, 0
    %s67 = sadd.s32 %s66, 1
    %s68 = scalar_select %p65, %s66, %s67
    %p71 = pneg %p65
    %p72 = scmp.eq.s32.totalorder %s18, 7
    %p73 = por %p71, %p72
    %p74 = scmp.ne.s32.totalorder %s66, %s69
    %p75 = scmp.eq.s32.totalorder %s18, 0
    %p76 = por %p74, %p75
    %p77 = scmp.ne.s32.totalorder %s66, %s69
    %p78 = scmp.eq.s32.totalorder %s23, 7
    %p79 = por %p77, %p78
    %p80 = scmp.ne.s32.totalorder %s69, %s70
    %p81 = scmp.eq.s32.totalorder %s23, 0
    %p82 = por %p80, %p81
    %p83 = scmp.ne.s32.totalorder %s69, %s70
    %p84 = scmp.eq.s32.totalorder %s24, 7
    %p85 = por %p83, %p84
    %p87 = scmp.ne.s32.totalorder %s70, %s86
    %p88 = scmp.eq.s32.totalorder %s24, 0
    %p89 = por %p87, %p88
    %s90 = ssub.s32 %s26, %s33
    %p91 = scmp.eq.s32.totalorder %s90, 0
    %s93 = sadd.s32 %s92, 1
    %s94 = scalar_select %p91, %s92, %s93
    %p97 = pneg %p91
    %p98 = scmp.eq.s32.totalorder %s18, 7
    %p99 = por %p97, %p98
    %p100 = scmp.ne.s32.totalorder %s92, %s95
    %p101 = scmp.eq.s32.totalorder %s18, 0
    %p102 = por %p100, %p101
    %p103 = scmp.ne.s32.totalorder %s92, %s95
    %p104 = scmp.eq.s32.totalorder %s23, 7
    %p105 = por %p103, %p104
    %p106 = scmp.ne.s32.totalorder %s95, %s96
    %p107 = scmp.eq.s32.totalorder %s23, 0
    %p108 = por %p106, %p107
    %p109 = scmp.ne.s32.totalorder %s95, %s96
    %p110 = scmp.eq.s32.totalorder %s24, 7
    %p111 = por %p109, %p110
    %p113 = scmp.ne.s32.totalorder %s96, %s112
    %p114 = scmp.eq.s32.totalorder %s24, 0
    %p115 = por %p113, %p114
    %s116 = ssub.s32 %s26, %s33
    %p117 = scmp.eq.s32.totalorder %s116, 0
    %s119 = sadd.s32 %s118, 1
    %s120 = scalar_select %p117, %s118, %s119
    %p123 = pneg %p117
    %p124 = scmp.eq.s32.totalorder %s18, 7
    %p125 = por %p123, %p124
    %p126 = scmp.ne.s32.totalorder %s118, %s121
    %p127 = scmp.eq.s32.totalorder %s18, 0
    %p128 = por %p126, %p127
    %p129 = scmp.ne.s32.totalorder %s118, %s121
    %p130 = scmp.eq.s32.totalorder %s23, 7
    %p131 = por %p129, %p130
    %p132 = scmp.ne.s32.totalorder %s121, %s122
    %p133 = scmp.eq.s32.totalorder %s23, 0
    %p134 = por %p132, %p133
    %p135 = scmp.ne.s32.totalorder %s121, %s122
    %p136 = scmp.eq.s32.totalorder %s24, 7
    %p137 = por %p135, %p136
    %p139 = scmp.ne.s32.totalorder %s122, %s138
    %p140 = scmp.eq.s32.totalorder %s24, 0
    %p141 = por %p139, %p140
    %s142 = ssub.s32 %s26, %s33
    %p143 = scmp.eq.s32.totalorder %s142, 0
    %s145 = sadd.s32 %s144, 1
    %s146 = scalar_select %p143, %s144, %s145
    %p149 = pneg %p143
    %p150 = scmp.eq.s32.totalorder %s18, 7
    %p151 = por %p149, %p150
    %p152 = scmp.ne.s32.totalorder %s144, %s147
    %p153 = scmp.eq.s32.totalorder %s18, 0
    %p154 = por %p152, %p153
    %p155 = scmp.ne.s32.totalorder %s144, %s147
    %p156 = scmp.eq.s32.totalorder %s23, 7
    %p157 = por %p155, %p156
    %p158 = scmp.ne.s32.totalorder %s147, %s148
    %p159 = scmp.eq.s32.totalorder %s23, 0
    %p160 = por %p158, %p159
    %p161 = scmp.ne.s32.totalorder %s147, %s148
    %p162 = scmp.eq.s32.totalorder %s24, 7
    %p163 = por %p161, %p162
    %p165 = scmp.ne.s32.totalorder %s148, %s164
    %p166 = scmp.eq.s32.totalorder %s24, 0
    %p167 = por %p165, %p166
    %s168 = ssub.s32 %s26, %s33
    %p169 = scmp.eq.s32.totalorder %s168, 0
    %s171 = sadd.s32 %s170, 1
    %s172 = scalar_select %p169, %s170, %s171
    %p175 = pneg %p169
    %p176 = scmp.eq.s32.totalorder %s18, 7
    %p177 = por %p175, %p176
    %p178 = scmp.ne.s32.totalorder %s170, %s173
    %p179 = scmp.eq.s32.totalorder %s18, 0
    %p180 = por %p178, %p179
    %p181 = scmp.ne.s32.totalorder %s170, %s173
    %p182 = scmp.eq.s32.totalorder %s23, 7
    %p183 = por %p181, %p182
    %p184 = scmp.ne.s32.totalorder %s173, %s174
    %p185 = scmp.eq.s32.totalorder %s23, 0
    %p186 = por %p184, %p185
    %p187 = scmp.ne.s32.totalorder %s173, %s174
    %p188 = scmp.eq.s32.totalorder %s24, 7
    %p189 = por %p187, %p188
    %p191 = scmp.ne.s32.totalorder %s174, %s190
    %p192 = scmp.eq.s32.totalorder %s24, 0
    %p193 = por %p191, %p192
    %s194 = ssub.s32 %s26, %s33
    %p195 = scmp.eq.s32.totalorder %s194, 0
    %s197 = sadd.s32 %s196, 1
    %s198 = scalar_select %p195, %s196, %s197
    %p201 = pneg %p195
    %p202 = scmp.eq.s32.totalorder %s18, 7
    %p203 = por %p201, %p202
    %p204 = scmp.ne.s32.totalorder %s196, %s199
    %p205 = scmp.eq.s32.totalorder %s18, 0
    %p206 = por %p204, %p205
    %p207 = scmp.ne.s32.totalorder %s196, %s199
    %p208 = scmp.eq.s32.totalorder %s23, 7
    %p209 = por %p207, %p208
    %p210 = scmp.ne.s32.totalorder %s199, %s200
    %p211 = scmp.eq.s32.totalorder %s23, 0
    %p212 = por %p210, %p211
    %p213 = scmp.ne.s32.totalorder %s199, %s200
    %p214 = scmp.eq.s32.totalorder %s24, 7
    %p215 = por %p213, %p214
    %p217 = scmp.ne.s32.totalorder %s200, %s216
    %p218 = scmp.eq.s32.totalorder %s24, 0
    %p219 = por %p217, %p218
    %s220 = ssub.s32 %s26, %s33
    %p221 = scmp.eq.s32.totalorder %s220, 0
    %s223 = sadd.s32 %s222, 1
    %s224 = scalar_select %p221, %s222, %s223
    %p227 = pneg %p221
    %p228 = scmp.eq.s32.totalorder %s18, 7
    %p229 = por %p227, %p228
    %p230 = scmp.ne.s32.totalorder %s222, %s225
    %p231 = scmp.eq.s32.totalorder %s18, 0
    %p232 = por %p230, %p231
    %p233 = scmp.ne.s32.totalorder %s222, %s225
    %p234 = scmp.eq.s32.totalorder %s23, 7
    %p235 = por %p233, %p234
    %p236 = scmp.ne.s32.totalorder %s225, %s226
    %p237 = scmp.eq.s32.totalorder %s23, 0
    %p238 = por %p236, %p237
    %p239 = scmp.ne.s32.totalorder %s225, %s226
    %p240 = scmp.eq.s32.totalorder %s24, 7
    %p241 = por %p239, %p240
    %p243 = scmp.ne.s32.totalorder %s226, %s242
    %p244 = scmp.eq.s32.totalorder %s24, 0
    %p245 = por %p243, %p244
    %s246 = ssub.s32 %s26, %s33
    %p247 = scmp.eq.s32.totalorder %s246, 0
    %s249 = sadd.s32 %s248, 1
    %s250 = scalar_select %p247, %s248, %s249
    %p253 = pneg %p247
    %p254 = scmp.eq.s32.totalorder %s18, 7
    %p255 = por %p253, %p254
    %p256 = scmp.ne.s32.totalorder %s248, %s251
    %p257 = scmp.eq.s32.totalorder %s18, 0
    %p258 = por %p256, %p257
    %p259 = scmp.ne.s32.totalorder %s248, %s251
    %p260 = scmp.eq.s32.totalorder %s23, 7
    %p261 = por %p259, %p260
    %p262 = scmp.ne.s32.totalorder %s251, %s252
    %p263 = scmp.eq.s32.totalorder %s23, 0
    %p264 = por %p262, %p263
    %p265 = scmp.ne.s32.totalorder %s251, %s252
    %p266 = scmp.eq.s32.totalorder %s24, 7
    %p267 = por %p265, %p266
    %p269 = scmp.ne.s32.totalorder %s252, %s268
    %p270 = scmp.eq.s32.totalorder %s24, 0
    %p271 = por %p269, %p270
    %s273 = sadd.s32 %s272, 1
    %p276 = scmp.eq.s32.totalorder %s18, 7
    %p277 = scmp.ne.s32.totalorder %s272, %s274
    %p278 = scmp.eq.s32.totalorder %s18, 0
    %p279 = por %p277, %p278
    %p280 = scmp.ne.s32.totalorder %s272, %s274
    %p281 = scmp.eq.s32.totalorder %s23, 7
    %p282 = por %p280, %p281
    %p283 = scmp.ne.s32.totalorder %s274, %s275
    %p284 = scmp.eq.s32.totalorder %s23, 0
    %p285 = por %p283, %p284
    %p286 = scmp.ne.s32.totalorder %s274, %s275
    %p287 = scmp.eq.s32.totalorder %s24, 7
    %p288 = por %p286, %p287
    %p290 = scmp.ne.s32.totalorder %s275, %s289
    %p291 = scmp.eq.s32.totalorder %s24, 0
    %p292 = por %p290, %p291
    %s294 = sadd.s32 %s293, 1
    %p297 = scmp.eq.s32.totalorder %s18, 7
    %p298 = scmp.ne.s32.totalorder %s293, %s295
    %p299 = scmp.eq.s32.totalorder %s18, 0
    %p300 = por %p298, %p299
    %p301 = scmp.ne.s32.totalorder %s293, %s295
    %p302 = scmp.eq.s32.totalorder %s23, 7
    %p303 = por %p301, %p302
    %p304 = scmp.ne.s32.totalorder %s295, %s296
    %p305 = scmp.eq.s32.totalorder %s23, 0
    %p306 = por %p304, %p305
    %p307 = scmp.ne.s32.totalorder %s295, %s296
    %p308 = scmp.eq.s32.totalorder %s24, 7
    %p309 = por %p307, %p308
    %p311 = scmp.ne.s32.totalorder %s296, %s310
    %p312 = scmp.eq.s32.totalorder %s24, 0
    %p313 = por %p311, %p312
    %s315 = sadd.s32 %s314, 1
    %p318 = scmp.eq.s32.totalorder %s18, 7
    %p319 = scmp.ne.s32.totalorder %s314, %s316
    %p320 = scmp.eq.s32.totalorder %s18, 0
    %p321 = por %p319, %p320
    %p322 = scmp.ne.s32.totalorder %s314, %s316
    %p323 = scmp.eq.s32.totalorder %s23, 7
    %p324 = por %p322, %p323
    %p325 = scmp.ne.s32.totalorder %s316, %s317
    %p326 = scmp.eq.s32.totalorder %s23, 0
    %p327 = por %p325, %p326
    %p328 = scmp.ne.s32.totalorder %s316, %s317
    %p329 = scmp.eq.s32.totalorder %s24, 7
    %p330 = por %p328, %p329
    %p332 = scmp.ne.s32.totalorder %s317, %s331
    %p333 = scmp.eq.s32.totalorder %s24, 0
    %p334 = por %p332, %p333
    %s335 = ssub.s32 %s25, %s37
    %p336 = scmp.eq.s32.totalorder %s335, 0
    %s338 = sadd.s32 %s337, 1
    %s339 = scalar_select %p336, %s337, %s338
    %p342 = pneg %p336
    %p343 = scmp.eq.s32.totalorder %s18, 7
    %p344 = por %p342, %p343
    %p345 = scmp.ne.s32.totalorder %s337, %s340
    %p346 = scmp.eq.s32.totalorder %s18, 0
    %p347 = por %p345, %p346
    %p348 = scmp.ne.s32.totalorder %s337, %s340
    %p349 = scmp.eq.s32.totalorder %s23, 7
    %p350 = por %p348, %p349
    %p351 = scmp.ne.s32.totalorder %s340, %s341
    %p352 = scmp.eq.s32.totalorder %s23, 0
    %p353 = por %p351, %p352
    %p354 = scmp.ne.s32.totalorder %s340, %s341
    %p355 = scmp.eq.s32.totalorder %s24, 7
    %p356 = por %p354, %p355
    %p358 = scmp.ne.s32.totalorder %s341, %s357
    %p359 = scmp.eq.s32.totalorder %s24, 0
    %p360 = por %p358, %p359
    %p361 = scmp.le.s32.totalorder 1, %s18
    %p362 = scmp.lt.s32.totalorder %s18, 9
    %p363 = pnand %p361, %p362
    %p364 = pneg %p363
    // Predicated region
    $region9: #{bart_encoder_layer.2} parent=5 // pred_check
      _
    $region10: #{bart_encoder_layer.2} parent=5 // pred_check_branch
      %366 = sbr.rel (%p363) target = $region12
    $region11: #{bart_encoder_layer.2} parent=5 // pred_region
      %s367 = ssub.s32 %s18, 1
      // Predicated region
      $region13: #{bart_encoder_layer.2} parent=11 // pred_check
        %p368 = pneg %p285
      $region14: #{bart_encoder_layer.2} parent=11 // pred_check_branch
        %370 = sbr.rel (%p368) target = $region16
      $region15: #{bart_encoder_layer.2} parent=11 // pred_region
        _
      $region16: #{bart_encoder_layer.2} parent=11 // pred_fallthru
        _
      // Predicated region
      $region17: #{bart_encoder_layer.2} parent=11 // pred_check
        %p371 = pneg %p306
      $region18: #{bart_encoder_layer.2} parent=11 // pred_check_branch
        %373 = sbr.rel (%p371) target = $region20
      $region19: #{bart_encoder_layer.2} parent=11 // pred_region
        _
      $region20: #{bart_encoder_layer.2} parent=11 // pred_fallthru
        _
      // Predicated region
      $region21: #{bart_encoder_layer.2} parent=11 // pred_check
        %p374 = pneg %p327
      $region22: #{bart_encoder_layer.2} parent=11 // pred_check_branch
        %376 = sbr.rel (%p374) target = $region24
      $region23: #{bart_encoder_layer.2} parent=11 // pred_region
        _
      $region24: #{bart_encoder_layer.2} parent=11 // pred_fallthru
        _
    $region12: #{bart_encoder_layer.2} parent=5 // pred_fallthru
      _
    %p377 = scmp.lt.s32.totalorder %s18, 8
    // Predicated region
    $region25: #{bart_encoder_layer.2} parent=5 // pred_check
      %p378 = pneg %p377
    $region26: #{bart_encoder_layer.2} parent=5 // pred_check_branch
      %380 = sbr.rel (%p378) target = $region28
    $region27: #{bart_encoder_layer.2} parent=5 // pred_region
      // Predicated region
      $region29: #{bart_encoder_layer.2} parent=27 // pred_check
        %p381 = pneg %p50
      $region30: #{bart_encoder_layer.2} parent=27 // pred_check_branch
        %383 = sbr.rel (%p381) target = $region32
      $region31: #{bart_encoder_layer.2} parent=27 // pred_region
        %p384 = scmp.lt.s32.totalorder %s25, 1
        %s385 = scalar_select %p384, %s25, 1
        %s386 = smul.addr %s385, 8
        %s387 = scalar_lea.vmem %s0, %s386
      $region32: #{bart_encoder_layer.2} parent=27 // pred_fallthru
        _
      // Predicated region
      $region33: #{bart_encoder_layer.2} parent=27 // pred_check
        %p388 = pneg %p76
      $region34: #{bart_encoder_layer.2} parent=27 // pred_check_branch
        %390 = sbr.rel (%p388) target = $region36
      $region35: #{bart_encoder_layer.2} parent=27 // pred_region
        %p391 = scmp.lt.s32.totalorder %s25, 1
        %s392 = scalar_select %p391, %s25, 1
        %s393 = smul.addr %s392, 8
        %s394 = scalar_lea.vmem %s1, %s393
      $region36: #{bart_encoder_layer.2} parent=27 // pred_fallthru
        _
      // Predicated region
      $region37: #{bart_encoder_layer.2} parent=27 // pred_check
        %p395 = pneg %p102
      $region38: #{bart_encoder_layer.2} parent=27 // pred_check_branch
        %397 = sbr.rel (%p395) target = $region40
      $region39: #{bart_encoder_layer.2} parent=27 // pred_region
        %p398 = scmp.lt.s32.totalorder %s26, 3
        %s399 = scalar_select %p398, %s26, 3
        %s400 = smul.addr %s399, 4
        %s401 = smul.addr %s400, 8
        %s402 = scalar_lea.vmem %s2, %s401
      $region40: #{bart_encoder_layer.2} parent=27 // pred_fallthru
        _
      // Predicated region
      $region41: #{bart_encoder_layer.2} parent=27 // pred_check
        %p403 = pneg %p128
      $region42: #{bart_encoder_layer.2} parent=27 // pred_check_branch
        %405 = sbr.rel (%p403) target = $region44
      $region43: #{bart_encoder_layer.2} parent=27 // pred_region
        %p406 = scmp.lt.s32.totalorder %s26, 3
        %s407 = scalar_select %p406, %s26, 3
        %s408 = scalar_lea.vmem %s3, %s407
      $region44: #{bart_encoder_layer.2} parent=27 // pred_fallthru
        _
      // Predicated region
      $region45: #{bart_encoder_layer.2} parent=27 // pred_check
        %p409 = pneg %p154
      $region46: #{bart_encoder_layer.2} parent=27 // pred_check_branch
        %411 = sbr.rel (%p409) target = $region48
      $region47: #{bart_encoder_layer.2} parent=27 // pred_region
        %p412 = scmp.lt.s32.totalorder %s26, 3
        %s413 = scalar_select %p412, %s26, 3
        %s414 = smul.addr %s413, 4
        %s415 = smul.addr %s414, 8
        %s416 = scalar_lea.vmem %s4, %s415
      $region48: #{bart_encoder_layer.2} parent=27 // pred_fallthru
        _
      // Predicated region
      $region49: #{bart_encoder_layer.2} parent=27 // pred_check
        %p417 = pneg %p180
      $region50: #{bart_encoder_layer.2} parent=27 // pred_check_branch
        %419 = sbr.rel (%p417) target = $region52
      $region51: #{bart_encoder_layer.2} parent=27 // pred_region
        %p420 = scmp.lt.s32.totalorder %s26, 3
        %s421 = scalar_select %p420, %s26, 3
        %s422 = scalar_lea.vmem %s5, %s421
      $region52: #{bart_encoder_layer.2} parent=27 // pred_fallthru
        _
      // Predicated region
      $region53: #{bart_encoder_layer.2} parent=27 // pred_check
        %p423 = pneg %p206
      $region54: #{bart_encoder_layer.2} parent=27 // pred_check_branch
        %425 = sbr.rel (%p423) target = $region56
      $region55: #{bart_encoder_layer.2} parent=27 // pred_region
        %p426 = scmp.lt.s32.totalorder %s26, 3
        %s427 = scalar_select %p426, %s26, 3
        %s428 = smul.addr %s427, 4
        %s429 = smul.addr %s428, 8
        %s430 = scalar_lea.vmem %s6, %s429
      $region56: #{bart_encoder_layer.2} parent=27 // pred_fallthru
        _
      // Predicated region
      $region57: #{bart_encoder_layer.2} parent=27 // pred_check
        %p431 = pneg %p232
      $region58: #{bart_encoder_layer.2} parent=27 // pred_check_branch
        %433 = sbr.rel (%p431) target = $region60
      $region59: #{bart_encoder_layer.2} parent=27 // pred_region
        %p434 = scmp.lt.s32.totalorder %s26, 3
        %s435 = scalar_select %p434, %s26, 3
        %s436 = scalar_lea.vmem %s7, %s435
      $region60: #{bart_encoder_layer.2} parent=27 // pred_fallthru
        _
      // Predicated region
      $region61: #{bart_encoder_layer.2} parent=27 // pred_check
        %p437 = pneg %p258
      $region62: #{bart_encoder_layer.2} parent=27 // pred_check_branch
        %439 = sbr.rel (%p437) target = $region64
      $region63: #{bart_encoder_layer.2} parent=27 // pred_region
        %p440 = scmp.lt.s32.totalorder %s26, 3
        %s441 = scalar_select %p440, %s26, 3
        %s442 = smul.addr %s441, 8
        %s443 = scalar_lea.vmem %s8, %s442
      $region64: #{bart_encoder_layer.2} parent=27 // pred_fallthru
        _
    $region28: #{bart_encoder_layer.2} parent=5 // pred_fallthru
      _
    %p444 = scmp.le.s32.totalorder 1, %s18
    %p445 = scmp.lt.s32.totalorder %s18, 9
    %p446 = pnand %p444, %p445
    %p447 = pneg %p446
    // Predicated region
    $region65: #{bart_encoder_layer.2} parent=5 // pred_check
      _
    $region66: #{bart_encoder_layer.2} parent=5 // pred_check_branch
      %449 = sbr.rel (%p446) target = $region68
    $region67: #{bart_encoder_layer.2} parent=5 // pred_region
      %s450 = ssub.s32 %s18, 1
      %p451 = scmp.lt.s32.totalorder %s27, 1
      %s452 = scalar_select %p451, %s27, 1
      %s453 = smul.addr %s452, 8
      %s454 = scalar_lea.vmem %s0, %s453
      %p455 = pneg %p56
      %p456 = pneg %p53
      %p457 = scmp.lt.s32.totalorder %s27, 1
      %s458 = scalar_select %p457, %s27, 1
      %s459 = smul.addr %s458, 8
      %s460 = scalar_lea.vmem %s1, %s459
      %p461 = pneg %p82
      %p462 = pneg %p79
      %p463 = scmp.lt.s32.totalorder %s28, 3
      %s464 = scalar_select %p463, %s28, 3
      %s465 = smul.addr %s464, 4
      %s466 = smul.addr %s465, 8
      %s467 = scalar_lea.vmem %s2, %s466
      %p468 = pneg %p108
      %p469 = pneg %p105
      %p470 = scmp.lt.s32.totalorder %s28, 3
      %s471 = scalar_select %p470, %s28, 3
      %s472 = scalar_lea.vmem %s3, %s471
      %p473 = pneg %p134
      %p474 = pneg %p131
      %p475 = scmp.lt.s32.totalorder %s28, 3
      %s476 = scalar_select %p475, %s28, 3
      %s477 = smul.addr %s476, 4
      %s478 = smul.addr %s477, 8
      %s479 = scalar_lea.vmem %s4, %s478
      %p480 = pneg %p160
      %p481 = pneg %p157
      %p482 = scmp.lt.s32.totalorder %s28, 3
      %s483 = scalar_select %p482, %s28, 3
      %s484 = scalar_lea.vmem %s5, %s483
      %p485 = pneg %p186
      %p486 = pneg %p183
      %p487 = scmp.lt.s32.totalorder %s28, 3
      %s488 = scalar_select %p487, %s28, 3
      %s489 = smul.addr %s488, 4
      %s490 = smul.addr %s489, 8
      %s491 = scalar_lea.vmem %s6, %s490
      %p492 = pneg %p212
      %p493 = pneg %p209
      %p494 = scmp.lt.s32.totalorder %s28, 3
      %s495 = scalar_select %p494, %s28, 3
      %s496 = scalar_lea.vmem %s7, %s495
      %p497 = pneg %p238
      %p498 = pneg %p235
      %p499 = scmp.lt.s32.totalorder %s28, 3
      %s500 = scalar_select %p499, %s28, 3
      %s501 = smul.addr %s500, 8
      %s502 = scalar_lea.vmem %s8, %s501
      %p503 = pneg %p264
      %p504 = pneg %p261
      %p505 = pneg %p285
      %p506 = pneg %p282
      %p507 = pneg %p306
      %p508 = pneg %p303
      %p509 = pneg %p327
      %p510 = pneg %p324
      %p511 = pneg %p353
      %p512 = pneg %p350
      %p513 = scmp.lt.s32.totalorder %s27, 1
      %s514 = scalar_select %p513, %s27, 1
      %s515 = smul.addr %s514, 8
      %s516 = scalar_lea.vmem %s12, %s515
      %p517 = scmp.lt.s32.totalorder %s27, 1
      %s518 = scalar_select %p517, %s27, 1
      %s519 = smul.addr %s518, 8
      %s520 = scalar_lea.vmem %s0, %s519
      %p521 = scmp.lt.s32.totalorder %s27, 1
      %s522 = scalar_select %p521, %s27, 1
      %s523 = smul.addr %s522, 8
      %s524 = scalar_lea.vmem %s1, %s523
      %p525 = scmp.lt.s32.totalorder %s28, 3
      %s526 = scalar_select %p525, %s28, 3
      %s527 = smul.addr %s526, 4
      %s528 = smul.addr %s527, 8
      %s529 = scalar_lea.vmem %s2, %s528
      %p530 = scmp.lt.s32.totalorder %s28, 3
      %s531 = scalar_select %p530, %s28, 3
      %s532 = scalar_lea.vmem %s3, %s531
      %p533 = scmp.lt.s32.totalorder %s28, 3
      %s534 = scalar_select %p533, %s28, 3
      %s535 = smul.addr %s534, 4
      %s536 = smul.addr %s535, 8
      %s537 = scalar_lea.vmem %s4, %s536
      %p538 = scmp.lt.s32.totalorder %s28, 3
      %s539 = scalar_select %p538, %s28, 3
      %s540 = scalar_lea.vmem %s5, %s539
      %p541 = scmp.lt.s32.totalorder %s28, 3
      %s542 = scalar_select %p541, %s28, 3
      %s543 = smul.addr %s542, 4
      %s544 = smul.addr %s543, 8
      %s545 = scalar_lea.vmem %s6, %s544
      %p546 = scmp.lt.s32.totalorder %s28, 3
      %s547 = scalar_select %p546, %s28, 3
      %s548 = scalar_lea.vmem %s7, %s547
      %p549 = scmp.lt.s32.totalorder %s28, 3
      %s550 = scalar_select %p549, %s28, 3
      %s551 = smul.addr %s550, 8
      %s552 = scalar_lea.vmem %s8, %s551
      %p553 = scmp.lt.s32.totalorder %s27, 1
      %s554 = scalar_select %p553, %s27, 1
      %s555 = smul.addr %s554, 8
      %s556 = scalar_lea.vmem %s12, %s555
      %v557 = vld [vmem:[%s520] sm:$0xff]
      %p558 = scmp.eq.s32.totalorder %s28, 0
      // Predicated region
      $region69: #{bart_encoder_layer.2} parent=67 // pred_check
        %p559 = pneg %p558
      $region70: #{bart_encoder_layer.2} parent=67 // pred_check_branch
        %561 = sbr.rel (%p559) target = $region72
      $region71: #{bart_encoder_layer.2} parent=67 // pred_region
        %vm562 = vcmask 261120
        %563 = vst.msk [vmem:[#allocation2] sm:$0xff] %vm562, %v557
      $region72: #{bart_encoder_layer.2} parent=67 // pred_fallthru
        _
      %v564 = vld [vmem:[%s529] sm:$0xff]
      %v565 = vld [vmem:[%s529 + $0x8] sm:$0xff]
      %v566 = vld [vmem:[%s529 + $0x10] sm:$0xff]
      %v567 = vld [vmem:[%s529 + $0x18] sm:$0xff]
      %v568 = vld [vmem:[%s532] sm:$0x1]
      %v570 = vlaneseq
      %v571 = vshrl.u32 %v570, 7
      %v572 = vsub.s32 0, %v571
      %v573 = vrot.slane %v568, %v572
      %vm575 = vcmask 261120
      %v577 = vsel %vm575, %v557, 0
      %579 = vmatprep.subr.mxu0 0.0
      %580 = vmatpush1.msra.mxu0 0.0
      %581 = vmatprep.subr.mxu0 0.0
      %582 = vmatpush1.msra.mxu0 0.0
      %583 = vmatprep.subr.mxu0 0.0
      %584 = vmatpush1.msra.mxu0 0.0
      %585 = vmatprep.subr.mxu0 0.0
      %586 = vmatpush1.msra.mxu0 0.0
      %587 = vmatprep.subr.mxu0 0.0
      %588 = vmatpush1.msra.mxu0 0.0
      %589 = vmatprep.subr.mxu0 0.0
      %590 = vmatpush1.msra.mxu0 0.0
      %591 = vmatprep.subr.mxu0 0.0
      %592 = vmatpush1.msra.mxu0 0.0
      %593 = vmatprep.subr.mxu0 0.0
      %594 = vmatpush1.msra.mxu0 0.0
      %595 = vmatprep.subr.mxu0 0.0
      %596 = vmatpush1.msra.mxu0 0.0
      %597 = vmatprep.subr.mxu0 0.0
      %598 = vmatpush1.msra.mxu0 0.0
      %599 = vmatprep.subr.mxu0 0.0
      %600 = vmatpush1.msra.mxu0 0.0
      %601 = vmatprep.subr.mxu0 0.0
      %602 = vmatpush1.msra.mxu0 0.0
      %603 = vmatprep.subr.mxu0 0.0
      %604 = vmatpush1.msra.mxu0 %v567
      %605 = vmatprep.subr.mxu0 0.0
      %606 = vmatpush1.msra.mxu0 %v566
      %607 = vmatprep.subr.mxu0 0.0
      %608 = vmatpush1.msra.mxu0 %v565
      %609 = vmatprep.subr.mxu0 0.0
      %610 = vmatpush1.msra.mxu0 %v564
      %611 = vmatprep.subr.mxu0 0.0
      %612 = vmatpush2.msra.mxu0 0.0
      %613 = vmatprep.subr.mxu0 0.0
      %614 = vmatpush2.msra.mxu0 0.0
      %615 = vmatprep.subr.mxu0 0.0
      %616 = vmatpush2.msra.mxu0 0.0
      %617 = vmatprep.subr.mxu0 0.0
      %618 = vmatpush2.msra.mxu0 0.0
      %619 = vmatprep.subr.mxu0 0.0
      %620 = vmatpush2.msra.mxu0 0.0
      %621 = vmatprep.subr.mxu0 0.0
      %622 = vmatpush2.msra.mxu0 0.0
      %623 = vmatprep.subr.mxu0 0.0
      %624 = vmatpush2.msra.mxu0 0.0
      %625 = vmatprep.subr.mxu0 0.0
      %626 = vmatpush2.msra.mxu0 0.0
      %627 = vmatprep.subr.mxu0 0.0
      %628 = vmatpush2.msra.mxu0 0.0
      %629 = vmatprep.subr.mxu0 0.0
      %630 = vmatpush2.msra.mxu0 0.0
      %631 = vmatprep.subr.mxu0 0.0
      %632 = vmatpush2.msra.mxu0 0.0
      %633 = vmatprep.subr.mxu0 0.0
      %634 = vmatpush2.msra.mxu0 0.0
      %635 = vmatprep.subr.mxu0 0.0
      %636 = vmatpush2.msra.mxu0 0.0
      %637 = vmatprep.subr.mxu0 0.0
      %638 = vmatpush2.msra.mxu0 0.0
      %639 = vmatprep.subr.mxu0 0.0
      %640 = vmatpush2.msra.mxu0 0.0
      %641 = vmatprep.subr.mxu0 0.0
      %642 = vmatpush2.msra.mxu0 0.0
      %643 = vmatprep.mubr.f32.mxu0 0.0
      %644 = vmatmul.mubr.f32.gmra.mxu0 %v577
      %v645 = vpop.f32.mrf.mxu0
      %v646 = vadd.f32 %v573, %v645
      %v647 = vpop.f32.mrf.mxu0
      %648 = vdwg.mxu0
      %v649 = vmul.f32 %v646, 0.35355338
      %v650 = vld [vmem:[%s537] sm:$0xff]
      %v651 = vld [vmem:[%s537 + $0x8] sm:$0xff]
      %v652 = vld [vmem:[%s537 + $0x10] sm:$0xff]
      %v653 = vld [vmem:[%s537 + $0x18] sm:$0xff]
      %v654 = vld [vmem:[%s540] sm:$0x1]
      %v656 = vlaneseq
      %v657 = vshrl.u32 %v656, 7
      %v658 = vsub.s32 0, %v657
      %v659 = vrot.slane %v654, %v658
      %661 = vmatprep.subr.mxu0 0.0
      %662 = vmatpush1.msra.mxu0 0.0
      %663 = vmatprep.subr.mxu0 0.0
      %664 = vmatpush1.msra.mxu0 0.0
      %665 = vmatprep.subr.mxu0 0.0
      %666 = vmatpush1.msra.mxu0 0.0
      %667 = vmatprep.subr.mxu0 0.0
      %668 = vmatpush1.msra.mxu0 0.0
      %669 = vmatprep.subr.mxu0 0.0
      %670 = vmatpush1.msra.mxu0 0.0
      %671 = vmatprep.subr.mxu0 0.0
      %672 = vmatpush1.msra.mxu0 0.0
      %673 = vmatprep.subr.mxu0 0.0
      %674 = vmatpush1.msra.mxu0 0.0
      %675 = vmatprep.subr.mxu0 0.0
      %676 = vmatpush1.msra.mxu0 0.0
      %677 = vmatprep.subr.mxu0 0.0
      %678 = vmatpush1.msra.mxu0 0.0
      %679 = vmatprep.subr.mxu0 0.0
      %680 = vmatpush1.msra.mxu0 0.0
      %681 = vmatprep.subr.mxu0 0.0
      %682 = vmatpush1.msra.mxu0 0.0
      %683 = vmatprep.subr.mxu0 0.0
      %684 = vmatpush1.msra.mxu0 0.0
      %685 = vmatprep.subr.mxu0 0.0
      %686 = vmatpush1.msra.mxu0 %v653
      %687 = vmatprep.subr.mxu0 0.0
      %688 = vmatpush1.msra.mxu0 %v652
      %689 = vmatprep.subr.mxu0 0.0
      %690 = vmatpush1.msra.mxu0 %v651
      %691 = vmatprep.subr.mxu0 0.0
      %692 = vmatpush1.msra.mxu0 %v650
      %693 = vmatprep.subr.mxu0 0.0
      %694 = vmatpush2.msra.mxu0 0.0
      %695 = vmatprep.subr.mxu0 0.0
      %696 = vmatpush2.msra.mxu0 0.0
      %697 = vmatprep.subr.mxu0 0.0
      %698 = vmatpush2.msra.mxu0 0.0
      %699 = vmatprep.subr.mxu0 0.0
      %700 = vmatpush2.msra.mxu0 0.0
      %701 = vmatprep.subr.mxu0 0.0
      %702 = vmatpush2.msra.mxu0 0.0
      %703 = vmatprep.subr.mxu0 0.0
      %704 = vmatpush2.msra.mxu0 0.0
      %705 = vmatprep.subr.mxu0 0.0
      %706 = vmatpush2.msra.mxu0 0.0
      %707 = vmatprep.subr.mxu0 0.0
      %708 = vmatpush2.msra.mxu0 0.0
      %709 = vmatprep.subr.mxu0 0.0
      %710 = vmatpush2.msra.mxu0 0.0
      %711 = vmatprep.subr.mxu0 0.0
      %712 = vmatpush2.msra.mxu0 0.0
      %713 = vmatprep.subr.mxu0 0.0
      %714 = vmatpush2.msra.mxu0 0.0
      %715 = vmatprep.subr.mxu0 0.0
      %716 = vmatpush2.msra.mxu0 0.0
      %717 = vmatprep.subr.mxu0 0.0
      %718 = vmatpush2.msra.mxu0 0.0
      %719 = vmatprep.subr.mxu0 0.0
      %720 = vmatpush2.msra.mxu0 0.0
      %721 = vmatprep.subr.mxu0 0.0
      %722 = vmatpush2.msra.mxu0 0.0
      %723 = vmatprep.subr.mxu0 0.0
      %724 = vmatpush2.msra.mxu0 0.0
      %725 = vmatprep.mubr.f32.mxu0 0.0
      %726 = vmatmul.mubr.f32.gmra.mxu0 %v577
      %v727 = vpop.f32.mrf.mxu0
      %v728 = vadd.f32 %v659, %v727
      %v729 = vpop.f32.mrf.mxu0
      %730 = vdwg.mxu0
      %v731 = vld [vmem:[%s545] sm:$0xff]
      %v732 = vld [vmem:[%s545 + $0x8] sm:$0xff]
      %v733 = vld [vmem:[%s545 + $0x10] sm:$0xff]
      %v734 = vld [vmem:[%s545 + $0x18] sm:$0xff]
      %v735 = vld [vmem:[%s548] sm:$0x1]
      %v737 = vlaneseq
      %v738 = vshrl.u32 %v737, 7
      %v739 = vsub.s32 0, %v738
      %v740 = vrot.slane %v735, %v739
      %742 = vmatprep.subr.mxu0 0.0
      %743 = vmatpush1.msra.mxu0 0.0
      %744 = vmatprep.subr.mxu0 0.0
      %745 = vmatpush1.msra.mxu0 0.0
      %746 = vmatprep.subr.mxu0 0.0
      %747 = vmatpush1.msra.mxu0 0.0
      %748 = vmatprep.subr.mxu0 0.0
      %749 = vmatpush1.msra.mxu0 0.0
      %750 = vmatprep.subr.mxu0 0.0
      %751 = vmatpush1.msra.mxu0 0.0
      %752 = vmatprep.subr.mxu0 0.0
      %753 = vmatpush1.msra.mxu0 0.0
      %754 = vmatprep.subr.mxu0 0.0
      %755 = vmatpush1.msra.mxu0 0.0
      %756 = vmatprep.subr.mxu0 0.0
      %757 = vmatpush1.msra.mxu0 0.0
      %758 = vmatprep.subr.mxu0 0.0
      %759 = vmatpush1.msra.mxu0 0.0
      %760 = vmatprep.subr.mxu0 0.0
      %761 = vmatpush1.msra.mxu0 0.0
      %762 = vmatprep.subr.mxu0 0.0
      %763 = vmatpush1.msra.mxu0 0.0
      %764 = vmatprep.subr.mxu0 0.0
      %765 = vmatpush1.msra.mxu0 0.0
      %766 = vmatprep.subr.mxu0 0.0
      %767 = vmatpush1.msra.mxu0 %v734
      %768 = vmatprep.subr.mxu0 0.0
      %769 = vmatpush1.msra.mxu0 %v733
      %770 = vmatprep.subr.mxu0 0.0
      %771 = vmatpush1.msra.mxu0 %v732
      %772 = vmatprep.subr.mxu0 0.0
      %773 = vmatpush1.msra.mxu0 %v731
      %774 = vmatprep.subr.mxu0 0.0
      %775 = vmatpush2.msra.mxu0 0.0
      %776 = vmatprep.subr.mxu0 0.0
      %777 = vmatpush2.msra.mxu0 0.0
      %778 = vmatprep.subr.mxu0 0.0
      %779 = vmatpush2.msra.mxu0 0.0
      %780 = vmatprep.subr.mxu0 0.0
      %781 = vmatpush2.msra.mxu0 0.0
      %782 = vmatprep.subr.mxu0 0.0
      %783 = vmatpush2.msra.mxu0 0.0
      %784 = vmatprep.subr.mxu0 0.0
      %785 = vmatpush2.msra.mxu0 0.0
      %786 = vmatprep.subr.mxu0 0.0
      %787 = vmatpush2.msra.mxu0 0.0
      %788 = vmatprep.subr.mxu0 0.0
      %789 = vmatpush2.msra.mxu0 0.0
      %790 = vmatprep.subr.mxu0 0.0
      %791 = vmatpush2.msra.mxu0 0.0
      %792 = vmatprep.subr.mxu0 0.0
      %793 = vmatpush2.msra.mxu0 0.0
      %794 = vmatprep.subr.mxu0 0.0
      %795 = vmatpush2.msra.mxu0 0.0
      %796 = vmatprep.subr.mxu0 0.0
      %797 = vmatpush2.msra.mxu0 0.0
      %798 = vmatprep.subr.mxu0 0.0
      %799 = vmatpush2.msra.mxu0 0.0
      %800 = vmatprep.subr.mxu0 0.0
      %801 = vmatpush2.msra.mxu0 0.0
      %802 = vmatprep.subr.mxu0 0.0
      %803 = vmatpush2.msra.mxu0 0.0
      %804 = vmatprep.subr.mxu0 0.0
      %805 = vmatpush2.msra.mxu0 0.0
      %806 = vmatprep.mubr.f32.mxu0 0.0
      %807 = vmatmul.mubr.f32.gmra.mxu0 %v577
      %v808 = vpop.f32.mrf.mxu0
      %v809 = vadd.f32 %v740, %v808
      %v810 = vpop.f32.mrf.mxu0
      %811 = vdwg.mxu0
      %v812 = vld [vmem:[%s524] sm:$0xff]
      %vm813 = vcmask 64512
      %v815 = vsel %vm813, %v649, 0
      %v818 = vsel %vm813, %v728, 0
      %820 = vmatprep.subr.mxu0 0.0
      %821 = vmatpush1.xpose.msra.mxu0 0.0
      %822 = vmatprep.subr.mxu0 0.0
      %823 = vmatpush1.xpose.msra.mxu0 0.0
      %824 = vmatprep.subr.mxu0 0.0
      %825 = vmatpush1.xpose.msra.mxu0 0.0
      %826 = vmatprep.subr.mxu0 0.0
      %827 = vmatpush1.xpose.msra.mxu0 0.0
      %828 = vmatprep.subr.mxu0 0.0
      %829 = vmatpush1.xpose.msra.mxu0 0.0
      %830 = vmatprep.subr.mxu0 0.0
      %831 = vmatpush1.xpose.msra.mxu0 0.0
      %832 = vmatprep.subr.mxu0 0.0
      %833 = vmatpush1.xpose.msra.mxu0 0.0
      %834 = vmatprep.subr.mxu0 0.0
      %835 = vmatpush1.xpose.msra.mxu0 0.0
      %836 = vmatprep.subr.mxu0 0.0
      %837 = vmatpush1.xpose.msra.mxu0 0.0
      %838 = vmatprep.subr.mxu0 0.0
      %839 = vmatpush1.xpose.msra.mxu0 0.0
      %840 = vmatprep.subr.mxu0 0.0
      %841 = vmatpush1.xpose.msra.mxu0 0.0
      %842 = vmatprep.subr.mxu0 0.0
      %843 = vmatpush1.xpose.msra.mxu0 0.0
      %844 = vmatprep.subr.mxu0 0.0
      %845 = vmatpush1.xpose.msra.mxu0 0.0
      %846 = vmatprep.subr.mxu0 0.0
      %847 = vmatpush1.xpose.msra.mxu0 0.0
      %848 = vmatprep.subr.mxu0 0.0
      %849 = vmatpush1.xpose.msra.mxu0 0.0
      %850 = vmatprep.subr.mxu0 0.0
      %851 = vmatpush1.xpose.msra.mxu0 %v818
      %852 = vmatprep.subr.mxu0 0.0
      %853 = vmatpush2.xpose.msra.mxu0 0.0
      %854 = vmatprep.subr.mxu0 0.0
      %855 = vmatpush2.xpose.msra.mxu0 0.0
      %856 = vmatprep.subr.mxu0 0.0
      %857 = vmatpush2.xpose.msra.mxu0 0.0
      %858 = vmatprep.subr.mxu0 0.0
      %859 = vmatpush2.xpose.msra.mxu0 0.0
      %860 = vmatprep.subr.mxu0 0.0
      %861 = vmatpush2.xpose.msra.mxu0 0.0
      %862 = vmatprep.subr.mxu0 0.0
      %863 = vmatpush2.xpose.msra.mxu0 0.0
      %864 = vmatprep.subr.mxu0 0.0
      %865 = vmatpush2.xpose.msra.mxu0 0.0
      %866 = vmatprep.subr.mxu0 0.0
      %867 = vmatpush2.xpose.msra.mxu0 0.0
      %868 = vmatprep.subr.mxu0 0.0
      %869 = vmatpush2.xpose.msra.mxu0 0.0
      %870 = vmatprep.subr.mxu0 0.0
      %871 = vmatpush2.xpose.msra.mxu0 0.0
      %872 = vmatprep.subr.mxu0 0.0
      %873 = vmatpush2.xpose.msra.mxu0 0.0
      %874 = vmatprep.subr.mxu0 0.0
      %875 = vmatpush2.xpose.msra.mxu0 0.0
      %876 = vmatprep.subr.mxu0 0.0
      %877 = vmatpush2.xpose.msra.mxu0 0.0
      %878 = vmatprep.subr.mxu0 0.0
      %879 = vmatpush2.xpose.msra.mxu0 0.0
      %880 = vmatprep.subr.mxu0 0.0
      %881 = vmatpush2.xpose.msra.mxu0 0.0
      %882 = vmatprep.subr.mxu0 0.0
      %883 = vmatpush2.xpose.msra.mxu0 0.0
      %884 = vmatprep.mubr.f32.mxu0 0.0
      %885 = vmatmul.mubr.f32.gmra.mxu0 %v815
      %v886 = vpop.f32.mrf.mxu0
      %v887 = vadd.f32 %v812, %v886
      %v888 = vpop.f32.mrf.mxu0
      %889 = vdwg.mxu0
      %v890 = vsel %vm813, %v887, -inf
      %891 = vmax.xlane.f32.xlu0 %v890
      %v892 = vpop.xlane.xlu0 %891
      %v893 = vsub.f32 %v887, %v892
      %v894 = vmul.f32 %v893, 1.442695
      %v895 = vpow.pop %v894
      %v896 = vsel %vm813, %v895, 0.0
      %897 = vadd.xlane.f32.xlu0 %v896
      %v898 = vpop.xlane.xlu0 %897
      %v899 = vrcp.pop %v898
      %v900 = vmul.f32 %v895, %v899
      %v902 = vsel %vm813, %v900, 0
      %904 = vmatprep.subr.mxu0 0.0
      %905 = vmatpush1.msra.mxu0 0.0
      %906 = vmatprep.subr.mxu0 0.0
      %907 = vmatpush1.msra.mxu0 0.0
      %908 = vmatprep.subr.mxu0 0.0
      %909 = vmatpush1.msra.mxu0 0.0
      %910 = vmatprep.subr.mxu0 0.0
      %911 = vmatpush1.msra.mxu0 0.0
      %912 = vmatprep.subr.mxu0 0.0
      %913 = vmatpush1.msra.mxu0 0.0
      %914 = vmatprep.subr.mxu0 0.0
      %915 = vmatpush1.msra.mxu0 0.0
      %916 = vmatprep.subr.mxu0 0.0
      %917 = vmatpush1.msra.mxu0 0.0
      %918 = vmatprep.subr.mxu0 0.0
      %919 = vmatpush1.msra.mxu0 0.0
      %920 = vmatprep.subr.mxu0 0.0
      %921 = vmatpush1.msra.mxu0 0.0
      %922 = vmatprep.subr.mxu0 0.0
      %923 = vmatpush1.msra.mxu0 0.0
      %924 = vmatprep.subr.mxu0 0.0
      %925 = vmatpush1.msra.mxu0 0.0
      %926 = vmatprep.subr.mxu0 0.0
      %927 = vmatpush1.msra.mxu0 0.0
      %928 = vmatprep.subr.mxu0 0.0
      %929 = vmatpush1.msra.mxu0 0.0
      %930 = vmatprep.subr.mxu0 0.0
      %931 = vmatpush1.msra.mxu0 0.0
      %932 = vmatprep.subr.mxu0 0.0
      %933 = vmatpush1.msra.mxu0 0.0
      %934 = vmatprep.subr.mxu0 0.0
      %935 = vmatpush1.msra.mxu0 %v809
      %936 = vmatprep.subr.mxu0 0.0
      %937 = vmatpush2.msra.mxu0 0.0
      %938 = vmatprep.subr.mxu0 0.0
      %939 = vmatpush2.msra.mxu0 0.0
      %940 = vmatprep.subr.mxu0 0.0
      %941 = vmatpush2.msra.mxu0 0.0
      %942 = vmatprep.subr.mxu0 0.0
      %943 = vmatpush2.msra.mxu0 0.0
      %944 = vmatprep.subr.mxu0 0.0
      %945 = vmatpush2.msra.mxu0 0.0
      %946 = vmatprep.subr.mxu0 0.0
      %947 = vmatpush2.msra.mxu0 0.0
      %948 = vmatprep.subr.mxu0 0.0
      %949 = vmatpush2.msra.mxu0 0.0
      %950 = vmatprep.subr.mxu0 0.0
      %951 = vmatpush2.msra.mxu0 0.0
      %952 = vmatprep.subr.mxu0 0.0
      %953 = vmatpush2.msra.mxu0 0.0
      %954 = vmatprep.subr.mxu0 0.0
      %955 = vmatpush2.msra.mxu0 0.0
      %956 = vmatprep.subr.mxu0 0.0
      %957 = vmatpush2.msra.mxu0 0.0
      %958 = vmatprep.subr.mxu0 0.0
      %959 = vmatpush2.msra.mxu0 0.0
      %960 = vmatprep.subr.mxu0 0.0
      %961 = vmatpush2.msra.mxu0 0.0
      %962 = vmatprep.subr.mxu0 0.0
      %963 = vmatpush2.msra.mxu0 0.0
      %964 = vmatprep.subr.mxu0 0.0
      %965 = vmatpush2.msra.mxu0 0.0
      %966 = vmatprep.subr.mxu0 0.0
      %967 = vmatpush2.msra.mxu0 0.0
      %968 = vmatprep.mubr.f32.mxu0 0.0
      %969 = vmatmul.mubr.f32.gmra.mxu0 %v902
      %v970 = vpop.f32.mrf.mxu0
      %v971 = vadd.f32 0.0, %v970
      %v972 = vpop.f32.mrf.mxu0
      %973 = vdwg.mxu0
      %v974 = vld [vmem:[#allocation2] sm:$0xff]
      %v975 = vld [vmem:[%s552] sm:$0xff]
      %v977 = vsel %vm813, %v971, 0
      %979 = vmatprep.subr.mxu0 0.0
      %980 = vmatpush1.msra.mxu0 0.0
      %981 = vmatprep.subr.mxu0 0.0
      %982 = vmatpush1.msra.mxu0 0.0
      %983 = vmatprep.subr.mxu0 0.0
      %984 = vmatpush1.msra.mxu0 0.0
      %985 = vmatprep.subr.mxu0 0.0
      %986 = vmatpush1.msra.mxu0 0.0
      %987 = vmatprep.subr.mxu0 0.0
      %988 = vmatpush1.msra.mxu0 0.0
      %989 = vmatprep.subr.mxu0 0.0
      %990 = vmatpush1.msra.mxu0 0.0
      %991 = vmatprep.subr.mxu0 0.0
      %992 = vmatpush1.msra.mxu0 0.0
      %993 = vmatprep.subr.mxu0 0.0
      %994 = vmatpush1.msra.mxu0 0.0
      %995 = vmatprep.subr.mxu0 0.0
      %996 = vmatpush1.msra.mxu0 0.0
      %997 = vmatprep.subr.mxu0 0.0
      %998 = vmatpush1.msra.mxu0 0.0
      %999 = vmatprep.subr.mxu0 0.0
      %1000 = vmatpush1.msra.mxu0 0.0
      %1001 = vmatprep.subr.mxu0 0.0
      %1002 = vmatpush1.msra.mxu0 0.0
      %1003 = vmatprep.subr.mxu0 0.0
      %1004 = vmatpush1.msra.mxu0 0.0
      %1005 = vmatprep.subr.mxu0 0.0
      %1006 = vmatpush1.msra.mxu0 0.0
      %1007 = vmatprep.subr.mxu0 0.0
      %1008 = vmatpush1.msra.mxu0 0.0
      %1009 = vmatprep.subr.mxu0 0.0
      %1010 = vmatpush1.msra.mxu0 %v975
      %1011 = vmatprep.subr.mxu0 0.0
      %1012 = vmatpush2.msra.mxu0 0.0
      %1013 = vmatprep.subr.mxu0 0.0
      %1014 = vmatpush2.msra.mxu0 0.0
      %1015 = vmatprep.subr.mxu0 0.0
      %1016 = vmatpush2.msra.mxu0 0.0
      %1017 = vmatprep.subr.mxu0 0.0
      %1018 = vmatpush2.msra.mxu0 0.0
      %1019 = vmatprep.subr.mxu0 0.0
      %1020 = vmatpush2.msra.mxu0 0.0
      %1021 = vmatprep.subr.mxu0 0.0
      %1022 = vmatpush2.msra.mxu0 0.0
      %1023 = vmatprep.subr.mxu0 0.0
      %1024 = vmatpush2.msra.mxu0 0.0
      %1025 = vmatprep.subr.mxu0 0.0
      %1026 = vmatpush2.msra.mxu0 0.0
      %1027 = vmatprep.subr.mxu0 0.0
      %1028 = vmatpush2.msra.mxu0 0.0
      %1029 = vmatprep.subr.mxu0 0.0
      %1030 = vmatpush2.msra.mxu0 0.0
      %1031 = vmatprep.subr.mxu0 0.0
      %1032 = vmatpush2.msra.mxu0 0.0
      %1033 = vmatprep.subr.mxu0 0.0
      %1034 = vmatpush2.msra.mxu0 0.0
      %1035 = vmatprep.subr.mxu0 0.0
      %1036 = vmatpush2.msra.mxu0 0.0
      %1037 = vmatprep.subr.mxu0 0.0
      %1038 = vmatpush2.msra.mxu0 0.0
      %1039 = vmatprep.subr.mxu0 0.0
      %1040 = vmatpush2.msra.mxu0 0.0
      %1041 = vmatprep.subr.mxu0 0.0
      %1042 = vmatpush2.msra.mxu0 0.0
      %1043 = vmatprep.mubr.f32.mxu0 0.0
      %1044 = vmatmul.mubr.f32.gmra.mxu0 %v977
      %v1045 = vpop.f32.mrf.mxu0
      %v1046 = vadd.f32 0.0, %v1045
      %v1047 = vpop.f32.mrf.mxu0
      %1048 = vdwg.mxu0
      %v1049 = vadd.f32 %v974, %v1046
      %1050 = vst.msk [vmem:[#allocation2] sm:$0xff] %vm575, %v1049
      %p1051 = scmp.eq.s32.totalorder %s28, 3
      // Predicated region
      $region73: #{bart_encoder_layer.2} parent=67 // pred_check
        %p1052 = pneg %p1051
      $region74: #{bart_encoder_layer.2} parent=67 // pred_check_branch
        %1054 = sbr.rel (%p1052) target = $region76
      $region75: #{bart_encoder_layer.2} parent=67 // pred_region
        %v1055 = vld [vmem:[#allocation2] sm:$0xff]
        %v1056 = vld [vmem:[%s9] sm:$0x1]
        %v1058 = vlaneseq
        %v1059 = vshrl.u32 %v1058, 7
        %v1060 = vsub.s32 0, %v1059
        %v1061 = vrot.slane %v1056, %v1060
        %v1063 = vadd.f32 %v1055, %v1061
        %v1064 = vsel %vm575, %v1063, 0.0
        %1065 = vadd.xlane.f32.xlu0 %v1064
        %v1066 = vpop.xlane.xlu0 %1065
        %v1067 = vrcp.pop 32.0
        %v1068 = vmul.f32 %v1066, %v1067
        %v1069 = vsub.f32 %v1063, %v1068
        %v1070 = vmul.f32 %v1069, %v1069
        %v1071 = vsel %vm575, %v1070, 0.0
        %1072 = vadd.xlane.f32.xlu0 %v1071
        %v1073 = vpop.xlane.xlu0 %1072
        %v1074 = vmul.f32 %v1073, %v1067
        %v1075 = vadd.f32 %v1074, 1e-05
        %v1076 = vrsqrt.pop %v1075
        %v1077 = vmul.f32 %v1069, %v1076
        %v1078 = vld [vmem:[%s10] sm:$0x1]
        %v1080 = vlaneseq
        %v1081 = vshrl.u32 %v1080, 7
        %v1082 = vsub.s32 0, %v1081
        %v1083 = vrot.slane %v1078, %v1082
        %v1085 = vmul.f32 %v1077, %v1083
        %v1086 = vld [vmem:[%s11] sm:$0x1]
        %v1088 = vlaneseq
        %v1089 = vshrl.u32 %v1088, 7
        %v1090 = vsub.s32 0, %v1089
        %v1091 = vrot.slane %v1086, %v1090
        %v1093 = vadd.f32 %v1085, %v1091
        %1094 = vst.msk [vmem:[%s556] sm:$0xff] %vm575, %v1093
      $region76: #{bart_encoder_layer.2} parent=67 // pred_fallthru
        _
      %p1095 = scmp.lt.s32.totalorder %s27, 1
      %s1096 = scalar_select %p1095, %s27, 1
      %s1097 = smul.addr %s1096, 8
      %s1098 = scalar_lea.vmem %s12, %s1097
      // Predicated region
      $region77: #{bart_encoder_layer.2} parent=67 // pred_check
        %p1099 = pneg %p350
      $region78: #{bart_encoder_layer.2} parent=67 // pred_check_branch
        %1101 = sbr.rel (%p1099) target = $region80
      $region79: #{bart_encoder_layer.2} parent=67 // pred_region
        _
      $region80: #{bart_encoder_layer.2} parent=67 // pred_fallthru
        _
    $region68: #{bart_encoder_layer.2} parent=5 // pred_fallthru
      _
    %p1102 = scmp.le.s32.totalorder 2, %s18
    // Predicated region
    $region81: #{bart_encoder_layer.2} parent=5 // pred_check
      %p1103 = pneg %p1102
    $region82: #{bart_encoder_layer.2} parent=5 // pred_check_branch
      %1105 = sbr.rel (%p1103) target = $region84
    $region83: #{bart_encoder_layer.2} parent=5 // pred_region
      %s1106 = ssub.s32 %s18, 2
      // Predicated region
      $region85: #{bart_encoder_layer.2} parent=83 // pred_check
        %p1107 = pneg %p356
      $region86: #{bart_encoder_layer.2} parent=83 // pred_check_branch
        %1109 = sbr.rel (%p1107) target = $region88
      $region87: #{bart_encoder_layer.2} parent=83 // pred_region
        %p1110 = scmp.lt.s32.totalorder %s29, 1
        %s1111 = scalar_select %p1110, %s29, 1
        %s1112 = smul.addr %s1111, 8
        %s1113 = scalar_lea.vmem %s12, %s1112
      $region88: #{bart_encoder_layer.2} parent=83 // pred_fallthru
        _
    $region84: #{bart_encoder_layer.2} parent=5 // pred_fallthru
      _
  $region6: #{bart_encoder_layer.2} parent=0 // loop_footer
    %s22 = sadd.s32 1, %s18
  $region7: #{bart_encoder_layer.2} parent=0 // loop_footer_branch
    %17 = sbr.rel target = $region3
  $region8: #{bart_encoder_layer.2} parent=0 // loop_exit
    _

// kernel: bart_encoder_layer.3
$region0: #{bart_encoder_layer.3}
  #allocation0 [shape = 'u32[]', space=smem, size = 0x4, offset = 0x4, fixed_abs, tag = 'smem constant byte address 0x4 - core index']
  #allocation1 [shape = 'u32[144,128]{1,0:T(1,128)}', space=vmem, size = 0x12000, scoped, tag = 'internal scratch']
  #allocation2 [shape = 'f32[8,32]{1,0:T(8,128)}', space=vmem, size = 0x1000, scoped, tag = 'scratch operand']
  %s0 = inlined_call_operand.vmem [shape: f32[2,8,32], index: 0, kind: input, shape index: {}]
  %s1 = inlined_call_operand.vmem [shape: f32[32,64], index: 1, kind: input, shape index: {}]
  %s2 = inlined_call_operand.vmem [shape: f32[1,64], index: 2, kind: input, shape index: {}]
  %s3 = inlined_call_operand.vmem [shape: f32[64,32], index: 3, kind: input, shape index: {}]
  %s4 = inlined_call_operand.vmem [shape: f32[1,32], index: 4, kind: input, shape index: {}]
  %s5 = inlined_call_operand.vmem [shape: f32[1,32], index: 5, kind: input, shape index: {}]
  %s6 = inlined_call_operand.vmem [shape: f32[1,32], index: 6, kind: input, shape index: {}]
  %s7 = inlined_call_operand.hbm [shape: f32[2,8,32], index: 7, kind: output, shape index: {}]
  %s8 = sld [smem:[#allocation0]]
  $region69: #{bart_encoder_layer.3} parent=0
    _
  %s10 = ssub.s32 1, %s8
  %s11 = scalar_select 0, %s10, %s8
  $region1: #{bart_encoder_layer.3} parent=0
    #allocation3 [shape = 'u8[8192]{0}', space=vmem, size = 0x2000, scoped, tag = 'output window, operand 0']
    #allocation4 [shape = 's32[2]{0}', space=sflag, size = 0x8, scoped, tag = 'scoped memory for bart_encoder_layer.3']
    %12 = vsyncpa [#allocation4], 0
    %s13 = scalar_lea.sflag [#allocation4], 1
    %14 = vsyncpa %s13, 0
    loop: start=0, step=1, limit=4
    $region2: #{bart_encoder_layer.3} parent=1 // loop_pre_header
      _
    $region3: #{bart_encoder_layer.3} parent=1 // loop_header
      %s16 = sphi 0, %s20
      %p17 = scmp.ge.s32.totalorder %s16, 4
      %s23 = sphi 0, %s35
      %s24 = sphi 0, %s31
      %s25 = sphi 0, %s23
      %s26 = sphi 0, %s24
      %s27 = sphi 0, %s25
      %s28 = sphi 0, %s26
      %s38 = sphi 0, %s40
      %s41 = sphi 0, %s38
      %s42 = sphi 0, %s41
      %s58 = sphi 0, %s42
      %s64 = sphi 0, %s66
      %s67 = sphi 0, %s64
      %s68 = sphi 0, %s67
      %s84 = sphi 0, %s68
      %s90 = sphi 0, %s92
      %s93 = sphi 0, %s90
      %s94 = sphi 0, %s93
      %s110 = sphi 0, %s94
      %s116 = sphi 0, %s118
      %s119 = sphi 0, %s116
      %s120 = sphi 0, %s119
      %s136 = sphi 0, %s120
      %s140 = sphi 0, %s140
      %s142 = sphi 0, %s140
      %s143 = sphi 0, %s142
      %s157 = sphi 0, %s143
      %s161 = sphi 0, %s161
      %s163 = sphi 0, %s161
      %s164 = sphi 0, %s163
      %s178 = sphi 0, %s164
      %s182 = sphi 0, %s182
      %s184 = sphi 0, %s182
      %s185 = sphi 0, %s184
      %s199 = sphi 0, %s185
      %s205 = sphi 0, %s207
      %s208 = sphi 0, %s205
      %s209 = sphi 0, %s208
      %s225 = sphi 0, %s209
    $region4: #{bart_encoder_layer.3} parent=1 // loop_header_branch
      %19 = sbr.rel (%p17) target = $region8
    $region5: #{bart_encoder_layer.3} parent=1 // loop_body
      %s21 = ssub.s32 %s16, 1
      %s22 = ssub.s32 %s16, 2
      %s29 = sadd.s32 1, %s24
      %p30 = scmp.ge.s32.totalorder %s29, 1
      %s31 = scalar_select %p30, 0, %s29
      %s32 = sadd.s32 1, %s23
      %s33 = scalar_select %p30, %s32, %s23
      %p34 = scmp.ge.s32.totalorder %s33, 2
      %s35 = scalar_select %p34, 0, %s33
      %s36 = ssub.s32 %s23, %s35
      %p37 = scmp.eq.s32.totalorder %s36, 0
      %s39 = sadd.s32 %s38, 1
      %s40 = scalar_select %p37, %s38, %s39
      %p43 = pneg %p37
      %p44 = scmp.eq.s32.totalorder %s16, 1
      %p45 = por %p43, %p44
      %p46 = scmp.ne.s32.totalorder %s38, %s41
      %p47 = scmp.eq.s32.totalorder %s16, 0
      %p48 = por %p46, %p47
      %p49 = scmp.ne.s32.totalorder %s38, %s41
      %p50 = scmp.eq.s32.totalorder %s21, 1
      %p51 = por %p49, %p50
      %p52 = scmp.ne.s32.totalorder %s41, %s42
      %p53 = scmp.eq.s32.totalorder %s21, 0
      %p54 = por %p52, %p53
      %p55 = scmp.ne.s32.totalorder %s41, %s42
      %p56 = scmp.eq.s32.totalorder %s22, 1
      %p57 = por %p55, %p56
      %p59 = scmp.ne.s32.totalorder %s42, %s58
      %p60 = scmp.eq.s32.totalorder %s22, 0
      %p61 = por %p59, %p60
      %s62 = ssub.s32 %s24, %s31
      %p63 = scmp.eq.s32.totalorder %s62, 0
      %s65 = sadd.s32 %s64, 1
      %s66 = scalar_select %p63, %s64, %s65
      %p69 = pneg %p63
      %p70 = scmp.eq.s32.totalorder %s16, 1
      %p71 = por %p69, %p70
      %p72 = scmp.ne.s32.totalorder %s64, %s67
      %p73 = scmp.eq.s32.totalorder %s16, 0
      %p74 = por %p72, %p73
      %p75 = scmp.ne.s32.totalorder %s64, %s67
      %p76 = scmp.eq.s32.totalorder %s21, 1
      %p77 = por %p75, %p76
      %p78 = scmp.ne.s32.totalorder %s67, %s68
      %p79 = scmp.eq.s32.totalorder %s21, 0
      %p80 = por %p78, %p79
      %p81 = scmp.ne.s32.totalorder %s67, %s68
      %p82 = scmp.eq.s32.totalorder %s22, 1
      %p83 = por %p81, %p82
      %p85 = scmp.ne.s32.totalorder %s68, %s84
      %p86 = scmp.eq.s32.totalorder %s22, 0
      %p87 = por %p85, %p86
      %s88 = ssub.s32 %s24, %s31
      %p89 = scmp.eq.s32.totalorder %s88, 0
      %s91 = sadd.s32 %s90, 1
      %s92 = scalar_select %p89, %s90, %s91
      %p95 = pneg %p89
      %p96 = scmp.eq.s32.totalorder %s16, 1
      %p97 = por %p95, %p96
      %p98 = scmp.ne.s32.totalorder %s90, %s93
      %p99 = scmp.eq.s32.totalorder %s16, 0
      %p100 = por %p98, %p99
      %p101 = scmp.ne.s32.totalorder %s90, %s93
      %p102 = scmp.eq.s32.totalorder %s21, 1
      %p103 = por %p101, %p102
      %p104 = scmp.ne.s32.totalorder %s93, %s94
      %p105 = scmp.eq.s32.totalorder %s21, 0
      %p106 = por %p104, %p105
      %p107 = scmp.ne.s32.totalorder %s93, %s94
      %p108 = scmp.eq.s32.totalorder %s22, 1
      %p109 = por %p107, %p108
      %p111 = scmp.ne.s32.totalorder %s94, %s110
      %p112 = scmp.eq.s32.totalorder %s22, 0
      %p113 = por %p111, %p112
      %s114 = ssub.s32 %s24, %s31
      %p115 = scmp.eq.s32.totalorder %s114, 0
      %s117 = sadd.s32 %s116, 1
      %s118 = scalar_select %p115, %s116, %s117
      %p121 = pneg %p115
      %p122 = scmp.eq.s32.totalorder %s16, 1
      %p123 = por %p121, %p122
      %p124 = scmp.ne.s32.totalorder %s116, %s119
      %p125 = scmp.eq.s32.totalorder %s16, 0
      %p126 = por %p124, %p125
      %p127 = scmp.ne.s32.totalorder %s116, %s119
      %p128 = scmp.eq.s32.totalorder %s21, 1
      %p129 = por %p127, %p128
      %p130 = scmp.ne.s32.totalorder %s119, %s120
      %p131 = scmp.eq.s32.totalorder %s21, 0
      %p132 = por %p130, %p131
      %p133 = scmp.ne.s32.totalorder %s119, %s120
      %p134 = scmp.eq.s32.totalorder %s22, 1
      %p135 = por %p133, %p134
      %p137 = scmp.ne.s32.totalorder %s120, %s136
      %p138 = scmp.eq.s32.totalorder %s22, 0
      %p139 = por %p137, %p138
      %s141 = sadd.s32 %s140, 1
      %p144 = scmp.eq.s32.totalorder %s16, 1
      %p145 = scmp.ne.s32.totalorder %s140, %s142
      %p146 = scmp.eq.s32.totalorder %s16, 0
      %p147 = por %p145, %p146
      %p148 = scmp.ne.s32.totalorder %s140, %s142
      %p149 = scmp.eq.s32.totalorder %s21, 1
      %p150 = por %p148, %p149
      %p151 = scmp.ne.s32.totalorder %s142, %s143
      %p152 = scmp.eq.s32.totalorder %s21, 0
      %p153 = por %p151, %p152
      %p154 = scmp.ne.s32.totalorder %s142, %s143
      %p155 = scmp.eq.s32.totalorder %s22, 1
      %p156 = por %p154, %p155
      %p158 = scmp.ne.s32.totalorder %s143, %s157
      %p159 = scmp.eq.s32.totalorder %s22, 0
      %p160 = por %p158, %p159
      %s162 = sadd.s32 %s161, 1
      %p165 = scmp.eq.s32.totalorder %s16, 1
      %p166 = scmp.ne.s32.totalorder %s161, %s163
      %p167 = scmp.eq.s32.totalorder %s16, 0
      %p168 = por %p166, %p167
      %p169 = scmp.ne.s32.totalorder %s161, %s163
      %p170 = scmp.eq.s32.totalorder %s21, 1
      %p171 = por %p169, %p170
      %p172 = scmp.ne.s32.totalorder %s163, %s164
      %p173 = scmp.eq.s32.totalorder %s21, 0
      %p174 = por %p172, %p173
      %p175 = scmp.ne.s32.totalorder %s163, %s164
      %p176 = scmp.eq.s32.totalorder %s22, 1
      %p177 = por %p175, %p176
      %p179 = scmp.ne.s32.totalorder %s164, %s178
      %p180 = scmp.eq.s32.totalorder %s22, 0
      %p181 = por %p179, %p180
      %s183 = sadd.s32 %s182, 1
      %p186 = scmp.eq.s32.totalorder %s16, 1
      %p187 = scmp.ne.s32.totalorder %s182, %s184
      %p188 = scmp.eq.s32.totalorder %s16, 0
      %p189 = por %p187, %p188
      %p190 = scmp.ne.s32.totalorder %s182, %s184
      %p191 = scmp.eq.s32.totalorder %s21, 1
      %p192 = por %p190, %p191
      %p193 = scmp.ne.s32.totalorder %s184, %s185
      %p194 = scmp.eq.s32.totalorder %s21, 0
      %p195 = por %p193, %p194
      %p196 = scmp.ne.s32.totalorder %s184, %s185
      %p197 = scmp.eq.s32.totalorder %s22, 1
      %p198 = por %p196, %p197
      %p200 = scmp.ne.s32.totalorder %s185, %s199
      %p201 = scmp.eq.s32.totalorder %s22, 0
      %p202 = por %p200, %p201
      %s203 = ssub.s32 %s23, %s35
      %p204 = scmp.eq.s32.totalorder %s203, 0
      %s206 = sadd.s32 %s205, 1
      %s207 = scalar_select %p204, %s205, %s206
      %p210 = pneg %p204
      %p211 = scmp.eq.s32.totalorder %s16, 1
      %p212 = por %p210, %p211
      %p213 = scmp.ne.s32.totalorder %s205, %s208
      %p214 = scmp.eq.s32.totalorder %s16, 0
      %p215 = por %p213, %p214
      %p216 = scmp.ne.s32.totalorder %s205, %s208
      %p217 = scmp.eq.s32.totalorder %s21, 1
      %p218 = por %p216, %p217
      %p219 = scmp.ne.s32.totalorder %s208, %s209
      %p220 = scmp.eq.s32.totalorder %s21, 0
      %p221 = por %p219, %p220
      %p222 = scmp.ne.s32.totalorder %s208, %s209
      %p223 = scmp.eq.s32.totalorder %s22, 1
      %p224 = por %p222, %p223
      %p226 = scmp.ne.s32.totalorder %s209, %s225
      %p227 = scmp.eq.s32.totalorder %s22, 0
      %p228 = por %p226, %p227
      %p229 = scmp.le.s32.totalorder 1, %s16
      %p230 = scmp.lt.s32.totalorder %s16, 3
      %p231 = pnand %p229, %p230
      %p232 = pneg %p231
      // Predicated region
      $region9: #{bart_encoder_layer.3} parent=5 // pred_check
        _
      $region10: #{bart_encoder_layer.3} parent=5 // pred_check_branch
        %234 = sbr.rel (%p231) target = $region12
      $region11: #{bart_encoder_layer.3} parent=5 // pred_region
        %s235 = ssub.s32 %s16, 1
        // Predicated region
        $region13: #{bart_encoder_layer.3} parent=11 // pred_check
          %p236 = pneg %p80
        $region14: #{bart_encoder_layer.3} parent=11 // pred_check_branch
          %238 = sbr.rel (%p236) target = $region16
        $region15: #{bart_encoder_layer.3} parent=11 // pred_region
          %p239 = scmp.lt.s32.totalorder %s26, 0
          %s240 = scalar_select %p239, %s26, 0
          %s241 = smul.addr %s240, 8
          %s242 = scalar_lea.vmem %s1, %s241
        $region16: #{bart_encoder_layer.3} parent=11 // pred_fallthru
          _
        // Predicated region
        $region17: #{bart_encoder_layer.3} parent=11 // pred_check
          %p243 = pneg %p106
        $region18: #{bart_encoder_layer.3} parent=11 // pred_check_branch
          %245 = sbr.rel (%p243) target = $region20
        $region19: #{bart_encoder_layer.3} parent=11 // pred_region
          %p246 = scmp.lt.s32.totalorder %s26, 0
          %s247 = scalar_select %p246, %s26, 0
          %s248 = scalar_lea.vmem %s2, %s247
        $region20: #{bart_encoder_layer.3} parent=11 // pred_fallthru
          _
        // Predicated region
        $region21: #{bart_encoder_layer.3} parent=11 // pred_check
          %p249 = pneg %p132
        $region22: #{bart_encoder_layer.3} parent=11 // pred_check_branch
          %251 = sbr.rel (%p249) target = $region24
        $region23: #{bart_encoder_layer.3} parent=11 // pred_region
          %s252 = smul.u32 8, %s26
          %p253 = scmp.lt.s32.totalorder %s252, 7
          %s254 = scalar_select %p253, %s252, 7
          %s255 = smul.addr %s254, 8
          %s256 = scalar_lea.vmem %s3, %s255
          %s257 = smul.u32 8, %s26
        $region24: #{bart_encoder_layer.3} parent=11 // pred_fallthru
          _
        // Predicated region
        $region25: #{bart_encoder_layer.3} parent=11 // pred_check
          %p258 = pneg %p153
        $region26: #{bart_encoder_layer.3} parent=11 // pred_check_branch
          %260 = sbr.rel (%p258) target = $region28
        $region27: #{bart_encoder_layer.3} parent=11 // pred_region
          _
        $region28: #{bart_encoder_layer.3} parent=11 // pred_fallthru
          _
        // Predicated region
        $region29: #{bart_encoder_layer.3} parent=11 // pred_check
          %p261 = pneg %p174
        $region30: #{bart_encoder_layer.3} parent=11 // pred_check_branch
          %263 = sbr.rel (%p261) target = $region32
        $region31: #{bart_encoder_layer.3} parent=11 // pred_region
          _
        $region32: #{bart_encoder_layer.3} parent=11 // pred_fallthru
          _
        // Predicated region
        $region33: #{bart_encoder_layer.3} parent=11 // pred_check
          %p264 = pneg %p195
        $region34: #{bart_encoder_layer.3} parent=11 // pred_check_branch
          %266 = sbr.rel (%p264) target = $region36
        $region35: #{bart_encoder_layer.3} parent=11 // pred_region
          _
        $region36: #{bart_encoder_layer.3} parent=11 // pred_fallthru
          _
      $region12: #{bart_encoder_layer.3} parent=5 // pred_fallthru
        _
      %p267 = scmp.lt.s32.totalorder %s16, 2
      // Predicated region
      $region37: #{bart_encoder_layer.3} parent=5 // pred_check
        %p268 = pneg %p267
      $region38: #{bart_encoder_layer.3} parent=5 // pred_check_branch
        %270 = sbr.rel (%p268) target = $region40
      $region39: #{bart_encoder_layer.3} parent=5 // pred_region
        // Predicated region
        $region41: #{bart_encoder_layer.3} parent=39 // pred_check
          %p271 = pneg %p48
        $region42: #{bart_encoder_layer.3} parent=39 // pred_check_branch
          %273 = sbr.rel (%p271) target = $region44
        $region43: #{bart_encoder_layer.3} parent=39 // pred_region
          %p274 = scmp.lt.s32.totalorder %s23, 1
          %s275 = scalar_select %p274, %s23, 1
          %s276 = smul.addr %s275, 8
          %s277 = scalar_lea.vmem %s0, %s276
        $region44: #{bart_encoder_layer.3} parent=39 // pred_fallthru
          _
      $region40: #{bart_encoder_layer.3} parent=5 // pred_fallthru
        _
      %p278 = scmp.le.s32.totalorder 1, %s16
      %p279 = scmp.lt.s32.totalorder %s16, 3
      %p280 = pnand %p278, %p279
      %p281 = pneg %p280
      // Predicated region
      $region45: #{bart_encoder_layer.3} parent=5 // pred_check
        _
      $region46: #{bart_encoder_layer.3} parent=5 // pred_check_branch
        %283 = sbr.rel (%p280) target = $region48
      $region47: #{bart_encoder_layer.3} parent=5 // pred_region
        %s284 = ssub.s32 %s16, 1
        %p285 = scmp.lt.s32.totalorder %s25, 1
        %s286 = scalar_select %p285, %s25, 1
        %s287 = smul.addr %s286, 8
        %s288 = scalar_lea.vmem %s0, %s287
        %p289 = pneg %p54
        %p290 = pneg %p51
        %p291 = scmp.lt.s32.totalorder %s26, 0
        %s292 = scalar_select %p291, %s26, 0
        %s293 = smul.addr %s292, 8
        %s294 = scalar_lea.vmem %s1, %s293
        %p295 = pneg %p80
        %p296 = pneg %p77
        %p297 = scmp.lt.s32.totalorder %s26, 0
        %s298 = scalar_select %p297, %s26, 0
        %s299 = scalar_lea.vmem %s2, %s298
        %p300 = pneg %p106
        %p301 = pneg %p103
        %s302 = smul.u32 8, %s26
        %p303 = scmp.lt.s32.totalorder %s302, 7
        %s304 = scalar_select %p303, %s302, 7
        %s305 = smul.addr %s304, 8
        %s306 = scalar_lea.vmem %s3, %s305
        %p307 = pneg %p132
        %p308 = pneg %p129
        %p309 = pneg %p153
        %p310 = pneg %p150
        %p311 = pneg %p174
        %p312 = pneg %p171
        %p313 = pneg %p195
        %p314 = pneg %p192
        %p315 = pneg %p221
        %p316 = pneg %p218
        %s317 = sand.u32 %s208, 1
        %s318 = scalar_lea.sflag [#allocation4], %s317
        %s319 = sand.u32 %s208, 1
        %s320 = smul.addr %s319, 8
        %s321 = scalar_lea.vmem [#allocation3], %s320
        %p322 = scmp.lt.s32.totalorder %s25, 1
        %s323 = scalar_select %p322, %s25, 1
        %s324 = smul.addr %s323, 8
        %s325 = scalar_lea.vmem %s0, %s324
        %p326 = scmp.lt.s32.totalorder %s26, 0
        %s327 = scalar_select %p326, %s26, 0
        %s328 = smul.addr %s327, 8
        %s329 = scalar_lea.vmem %s1, %s328
        %p330 = scmp.lt.s32.totalorder %s26, 0
        %s331 = scalar_select %p330, %s26, 0
        %s332 = scalar_lea.vmem %s2, %s331
        %s333 = smul.u32 8, %s26
        %p334 = scmp.lt.s32.totalorder %s333, 7
        %s335 = scalar_select %p334, %s333, 7
        %s336 = smul.addr %s335, 8
        %s337 = scalar_lea.vmem %s3, %s336
        %s338 = smul.u32 8, %s26
        %v339 = vld [vmem:[%s325] sm:$0xff]
        %p340 = scmp.eq.s32.totalorder %s26, 0
        // Predicated region
        $region49: #{bart_encoder_layer.3} parent=47 // pred_check
          %p341 = pneg %p340
        $region50: #{bart_encoder_layer.3} parent=47 // pred_check_branch
          %343 = sbr.rel (%p341) target = $region52
        $region51: #{bart_encoder_layer.3} parent=47 // pred_region
          %vm344 = vcmask 261120
          %345 = vst.msk [vmem:[#allocation2] sm:$0xff] %vm344, %v339
        $region52: #{bart_encoder_layer.3} parent=47 // pred_fallthru
          _
        %v346 = vld [vmem:[%s329] sm:$0xff]
        %v347 = vld [vmem:[%s329 + $0x8] sm:$0xff]
        %v348 = vld [vmem:[%s329 + $0x10] sm:$0xff]
        %v349 = vld [vmem:[%s329 + $0x18] sm:$0xff]
        %v350 = vld [vmem:[%s332] sm:$0x1]
        %v352 = vlaneseq
        %v353 = vshrl.u32 %v352, 7
        %v354 = vsub.s32 0, %v353
        %v355 = vrot.slane %v350, %v354
        %vm357 = vcmask 261120
        %v359 = vsel %vm357, %v339, 0
        %361 = vmatprep.subr.mxu0 0.0
        %362 = vmatpush1.msra.mxu0 0.0
        %363 = vmatprep.subr.mxu0 0.0
        %364 = vmatpush1.msra.mxu0 0.0
        %365 = vmatprep.subr.mxu0 0.0
        %366 = vmatpush1.msra.mxu0 0.0
        %367 = vmatprep.subr.mxu0 0.0
        %368 = vmatpush1.msra.mxu0 0.0
        %369 = vmatprep.subr.mxu0 0.0
        %370 = vmatpush1.msra.mxu0 0.0
        %371 = vmatprep.subr.mxu0 0.0
        %372 = vmatpush1.msra.mxu0 0.0
        %373 = vmatprep.subr.mxu0 0.0
        %374 = vmatpush1.msra.mxu0 0.0
        %375 = vmatprep.subr.mxu0 0.0
        %376 = vmatpush1.msra.mxu0 0.0
        %377 = vmatprep.subr.mxu0 0.0
        %378 = vmatpush1.msra.mxu0 0.0
        %379 = vmatprep.subr.mxu0 0.0
        %380 = vmatpush1.msra.mxu0 0.0
        %381 = vmatprep.subr.mxu0 0.0
        %382 = vmatpush1.msra.mxu0 0.0
        %383 = vmatprep.subr.mxu0 0.0
        %384 = vmatpush1.msra.mxu0 0.0
        %385 = vmatprep.subr.mxu0 0.0
        %386 = vmatpush1.msra.mxu0 %v349
        %387 = vmatprep.subr.mxu0 0.0
        %388 = vmatpush1.msra.mxu0 %v348
        %389 = vmatprep.subr.mxu0 0.0
        %390 = vmatpush1.msra.mxu0 %v347
        %391 = vmatprep.subr.mxu0 0.0
        %392 = vmatpush1.msra.mxu0 %v346
        %393 = vmatprep.subr.mxu0 0.0
        %394 = vmatpush2.msra.mxu0 0.0
        %395 = vmatprep.subr.mxu0 0.0
        %396 = vmatpush2.msra.mxu0 0.0
        %397 = vmatprep.subr.mxu0 0.0
        %398 = vmatpush2.msra.mxu0 0.0
        %399 = vmatprep.subr.mxu0 0.0
        %400 = vmatpush2.msra.mxu0 0.0
        %401 = vmatprep.subr.mxu0 0.0
        %402 = vmatpush2.msra.mxu0 0.0
        %403 = vmatprep.subr.mxu0 0.0
        %404 = vmatpush2.msra.mxu0 0.0
        %405 = vmatprep.subr.mxu0 0.0
        %406 = vmatpush2.msra.mxu0 0.0
        %407 = vmatprep.subr.mxu0 0.0
        %408 = vmatpush2.msra.mxu0 0.0
        %409 = vmatprep.subr.mxu0 0.0
        %410 = vmatpush2.msra.mxu0 0.0
        %411 = vmatprep.subr.mxu0 0.0
        %412 = vmatpush2.msra.mxu0 0.0
        %413 = vmatprep.subr.mxu0 0.0
        %414 = vmatpush2.msra.mxu0 0.0
        %415 = vmatprep.subr.mxu0 0.0
        %416 = vmatpush2.msra.mxu0 0.0
        %417 = vmatprep.subr.mxu0 0.0
        %418 = vmatpush2.msra.mxu0 0.0
        %419 = vmatprep.subr.mxu0 0.0
        %420 = vmatpush2.msra.mxu0 0.0
        %421 = vmatprep.subr.mxu0 0.0
        %422 = vmatpush2.msra.mxu0 0.0
        %423 = vmatprep.subr.mxu0 0.0
        %424 = vmatpush2.msra.mxu0 0.0
        %425 = vmatprep.mubr.f32.mxu0 0.0
        %426 = vmatmul.mubr.f32.gmra.mxu0 %v359
        %v427 = vpop.f32.mrf.mxu0
        %v428 = vadd.f32 %v355, %v427
        %v429 = vpop.f32.mrf.mxu0
        %430 = vdwg.mxu0
        %v431 = vmul.f32 %v428, %v428
        %v432 = vmul.f32 %v428, %v431
        %v433 = vmul.f32 %v432, 0.044715
        %v434 = vadd.f32 %v428, %v433
        %v435 = vmul.f32 %v434, 0.7978846
        %v436 = vtanh.pop %v435
        %v437 = vadd.f32 %v436, 1.0
        %v438 = vmul.f32 %v437, 0.5
        %v439 = vmul.f32 %v428, %v438
        %v440 = vld [vmem:[#allocation2] sm:$0xff]
        %v441 = vld [vmem:[%s337] sm:$0xff]
        %v442 = vld [vmem:[%s337 + $0x8] sm:$0xff]
        %v443 = vld [vmem:[%s337 + $0x10] sm:$0xff]
        %v444 = vld [vmem:[%s337 + $0x18] sm:$0xff]
        %v445 = vld [vmem:[%s337 + $0x20] sm:$0xff]
        %v446 = vld [vmem:[%s337 + $0x28] sm:$0xff]
        %v447 = vld [vmem:[%s337 + $0x30] sm:$0xff]
        %v448 = vld [vmem:[%s337 + $0x38] sm:$0xff]
        %vm449 = vcmask 523264
        %v451 = vsel %vm449, %v439, 0
        %453 = vmatprep.subr.mxu0 0.0
        %454 = vmatpush1.msra.mxu0 0.0
        %455 = vmatprep.subr.mxu0 0.0
        %456 = vmatpush1.msra.mxu0 0.0
        %457 = vmatprep.subr.mxu0 0.0
        %458 = vmatpush1.msra.mxu0 0.0
        %459 = vmatprep.subr.mxu0 0.0
        %460 = vmatpush1.msra.mxu0 0.0
        %461 = vmatprep.subr.mxu0 0.0
        %462 = vmatpush1.msra.mxu0 0.0
        %463 = vmatprep.subr.mxu0 0.0
        %464 = vmatpush1.msra.mxu0 0.0
        %465 = vmatprep.subr.mxu0 0.0
        %466 = vmatpush1.msra.mxu0 0.0
        %467 = vmatprep.subr.mxu0 0.0
        %468 = vmatpush1.msra.mxu0 0.0
        %469 = vmatprep.subr.mxu0 0.0
        %470 = vmatpush1.msra.mxu0 %v448
        %471 = vmatprep.subr.mxu0 0.0
        %472 = vmatpush1.msra.mxu0 %v447
        %473 = vmatprep.subr.mxu0 0.0
        %474 = vmatpush1.msra.mxu0 %v446
        %475 = vmatprep.subr.mxu0 0.0
        %476 = vmatpush1.msra.mxu0 %v445
        %477 = vmatprep.subr.mxu0 0.0
        %478 = vmatpush1.msra.mxu0 %v444
        %479 = vmatprep.subr.mxu0 0.0
        %480 = vmatpush1.msra.mxu0 %v443
        %481 = vmatprep.subr.mxu0 0.0
        %482 = vmatpush1.msra.mxu0 %v442
        %483 = vmatprep.subr.mxu0 0.0
        %484 = vmatpush1.msra.mxu0 %v441
        %485 = vmatprep.subr.mxu0 0.0
        %486 = vmatpush2.msra.mxu0 0.0
        %487 = vmatprep.subr.mxu0 0.0
        %488 = vmatpush2.msra.mxu0 0.0
        %489 = vmatprep.subr.mxu0 0.0
        %490 = vmatpush2.msra.mxu0 0.0
        %491 = vmatprep.subr.mxu0 0.0
        %492 = vmatpush2.msra.mxu0 0.0
        %493 = vmatprep.subr.mxu0 0.0
        %494 = vmatpush2.msra.mxu0 0.0
        %495 = vmatprep.subr.mxu0 0.0
        %496 = vmatpush2.msra.mxu0 0.0
        %497 = vmatprep.subr.mxu0 0.0
        %498 = vmatpush2.msra.mxu0 0.0
        %499 = vmatprep.subr.mxu0 0.0
        %500 = vmatpush2.msra.mxu0 0.0
        %501 = vmatprep.subr.mxu0 0.0
        %502 = vmatpush2.msra.mxu0 0.0
        %503 = vmatprep.subr.mxu0 0.0
        %504 = vmatpush2.msra.mxu0 0.0
        %505 = vmatprep.subr.mxu0 0.0
        %506 = vmatpush2.msra.mxu0 0.0
        %507 = vmatprep.subr.mxu0 0.0
        %508 = vmatpush2.msra.mxu0 0.0
        %509 = vmatprep.subr.mxu0 0.0
        %510 = vmatpush2.msra.mxu0 0.0
        %511 = vmatprep.subr.mxu0 0.0
        %512 = vmatpush2.msra.mxu0 0.0
        %513 = vmatprep.subr.mxu0 0.0
        %514 = vmatpush2.msra.mxu0 0.0
        %515 = vmatprep.subr.mxu0 0.0
        %516 = vmatpush2.msra.mxu0 0.0
        %517 = vmatprep.mubr.f32.mxu0 0.0
        %518 = vmatmul.mubr.f32.gmra.mxu0 %v451
        %v519 = vpop.f32.mrf.mxu0
        %v520 = vadd.f32 0.0, %v519
        %v521 = vpop.f32.mrf.mxu0
        %522 = vdwg.mxu0
        %v523 = vadd.f32 %v440, %v520
        %524 = vst.msk [vmem:[#allocation2] sm:$0xff] %vm357, %v523
        // Predicated region
        $region53: #{bart_encoder_layer.3} parent=47 // pred_check
          %p525 = pneg %p340
        $region54: #{bart_encoder_layer.3} parent=47 // pred_check_branch
          %527 = sbr.rel (%p525) target = $region56
        $region55: #{bart_encoder_layer.3} parent=47 // pred_region
          %v528 = vld [vmem:[#allocation2] sm:$0xff]
          %v529 = vld [vmem:[%s4] sm:$0x1]
          %v531 = vlaneseq
          %v532 = vshrl.u32 %v531, 7
          %v533 = vsub.s32 0, %v532
          %v534 = vrot.slane %v529, %v533
          %v536 = vadd.f32 %v528, %v534
          %v537 = vsel %vm357, %v536, 0.0
          %538 = vadd.xlane.f32.xlu0 %v537
          %v539 = vpop.xlane.xlu0 %538
          %v540 = vrcp.pop 32.0
          %v541 = vmul.f32 %v539, %v540
          %v542 = vsub.f32 %v536, %v541
          %v543 = vmul.f32 %v542, %v542
          %v544 = vsel %vm357, %v543, 0.0
          %545 = vadd.xlane.f32.xlu0 %v544
          %v546 = vpop.xlane.xlu0 %545
          %v547 = vmul.f32 %v546, %v540
          %v548 = vadd.f32 %v547, 1e-05
          %v549 = vrsqrt.pop %v548
          %v550 = vmul.f32 %v542, %v549
          %v551 = vld [vmem:[%s5] sm:$0x1]
          %v553 = vlaneseq
          %v554 = vshrl.u32 %v553, 7
          %v555 = vsub.s32 0, %v554
          %v556 = vrot.slane %v551, %v555
          %v558 = vmul.f32 %v550, %v556
          %v559 = vld [vmem:[%s6] sm:$0x1]
          %v561 = vlaneseq
          %v562 = vshrl.u32 %v561, 7
          %v563 = vsub.s32 0, %v562
          %v564 = vrot.slane %v559, %v563
          %v566 = vadd.f32 %v558, %v564
          %567 = vst.msk [vmem:[%s321] sm:$0xff] %vm357, %v566
        $region56: #{bart_encoder_layer.3} parent=47 // pred_fallthru
          _
        %s568 = sand.u32 %s208, 1
        %s569 = scalar_lea.sflag [#allocation4], %s568
        %s570 = sand.u32 %s208, 1
        %s571 = smul.addr %s570, 8
        %s572 = scalar_lea.vmem [#allocation3], %s571
        // Predicated region
        $region57: #{bart_encoder_layer.3} parent=47 // pred_check
          %p573 = pneg %p218
        $region58: #{bart_encoder_layer.3} parent=47 // pred_check_branch
          %575 = sbr.rel (%p573) target = $region60
        $region59: #{bart_encoder_layer.3} parent=47 // pred_region
          %s577 = ssub.s32 128, 128
          %578 = vsyncadd %s569, %s577
          %s579 = smul.addr %s25, 128
          %s580 = scalar_lea.hbm %s7, %s579
          %s582 = sshll.u32 %s572, 4
          %s583 = int_to_ptr.vmem [resolvable:$true] %s582
          %585 = dma.vmem_to_hbm [thread:$0]  %s583, 128, %s580, %s569
        $region60: #{bart_encoder_layer.3} parent=47 // pred_fallthru
          _
      $region48: #{bart_encoder_layer.3} parent=5 // pred_fallthru
        _
      %p586 = scmp.le.s32.totalorder 2, %s16
      // Predicated region
      $region61: #{bart_encoder_layer.3} parent=5 // pred_check
        %p587 = pneg %p586
      $region62: #{bart_encoder_layer.3} parent=5 // pred_check_branch
        %589 = sbr.rel (%p587) target = $region64
      $region63: #{bart_encoder_layer.3} parent=5 // pred_region
        %s590 = ssub.s32 %s16, 2
        // Predicated region
        $region65: #{bart_encoder_layer.3} parent=63 // pred_check
          %p591 = pneg %p224
        $region66: #{bart_encoder_layer.3} parent=63 // pred_check_branch
          %593 = sbr.rel (%p591) target = $region68
        $region67: #{bart_encoder_layer.3} parent=63 // pred_region
          %s594 = sand.u32 %s209, 1
          %s595 = scalar_lea.sflag [#allocation4], %s594
          %s596 = sand.u32 %s209, 1
          %s597 = smul.addr %s596, 8
          %s598 = scalar_lea.vmem [#allocation3], %s597
          %599 = dma.done %s595, 128
        $region68: #{bart_encoder_layer.3} parent=63 // pred_fallthru
          _
      $region64: #{bart_encoder_layer.3} parent=5 // pred_fallthru
        _
    $region6: #{bart_encoder_layer.3} parent=1 // loop_footer
      %s20 = sadd.s32 1, %s16
    $region7: #{bart_encoder_layer.3} parent=1 // loop_footer_branch
      %15 = sbr.rel target = $region3
    $region8: #{bart_encoder_layer.3} parent=1 // loop_exit
      _
    %600 = vsyncpa [#allocation4], 1
    %s601 = scalar_lea.sflag [#allocation4], 1
    %602 = vsyncpa %s601, 1

</llo_original>
